<compile_context>
chip_gen: v7x
topology: tpu7x:2x2x1
jax: 0.10.0
libtpu: 0.0.40
codegen_flags: <defaults>
</compile_context>

<pallas_src>
import functools

import jax
import jax.numpy as jnp
from jax import lax
from jax.experimental import pallas as pl
from jax.experimental.pallas import tpu as pltpu


def _round_up(v, m):
    return ((v + m - 1) // m) * m


def _band_budget_bytes():
    """Per-step VMEM byte budget for one band's working set (generation aware)."""
    try:
        kind = jax.devices()[0].device_kind.lower()
    except Exception:  # pragma: no cover - defensive
        kind = ""
    if ("v5" in kind) or ("v6" in kind):
        return 24 * 1024 * 1024      # 128 MiB VMEM parts: go wide (>=512 lanes)
    return 8 * 1024 * 1024           # v7x (64 MiB VMEM) / unknown: conservative


def _make_conv_kernel(offsets, c_in, c_out, l_tile, l_band_in,
                      use_bias, use_stack, mxu_precision):
    """Per-(batch, band) kernel.

    Refs (in order):
      x_hbm   : (B, C_in, L_in)        raw HBM ref (memory_space=pl.ANY)
      w_ref   : (C_out, KH*KW*C_in)    folded weights
      b_ref   : (C_out, 1)             optional bias
      o_ref   : (1, C_out, l_tile)     lane-dense output band
      xband   : VMEM (2, C_in, l_band_in)   double-buffered halo'd input band
      stacked : VMEM (KH*KW*C_in, l_tile)   tap-stacked matmul operand
      sem     : DMA semaphores (2,)
    """

    def kernel(*refs):
        it = iter(refs)
        x_hbm = next(it)
        w_ref = next(it)
        b_ref = next(it) if use_bias else None
        o_ref = next(it)
        xband = next(it)
        stacked = next(it) if use_stack else None
        sem = next(it)

        i = pl.program_id(0)          # batch
        j = pl.program_id(1)          # band within batch
        nb = pl.num_programs(1)
        slot = j % 2

        def band_copy(batch, band, slot_):
            start = pl.multiple_of(band * l_tile, 128)
            return pltpu.make_async_copy(
                x_hbm.at[batch, :, pl.ds(start, l_band_in)],
                xband.at[slot_],
                sem.at[slot_])

        # First band of a batch on this core: fetch it now.
        @pl.when(j == 0)
        def _():
            band_copy(i, j, slot).start()

        # Double-buffer: prefetch the next band of this batch into other slot.
        @pl.when(j + 1 < nb)
        def _():
            band_copy(i, j + 1, 1 - slot).start()

        band_copy(i, j, slot).wait()

        if use_stack:
            # Fold the KH*KW taps into the contraction dim (ref-level slices).
            for t, off in enumerate(offsets):
                stacked[t * c_in:(t + 1) * c_in, :] = (
                    xband[slot, :, pl.ds(off, l_tile)])
            x_mat = stacked[...]
        else:
            x_mat = xband[slot, :, pl.ds(offsets[0], l_tile)]

        acc = jnp.dot(w_ref[...], x_mat,
                      preferred_element_type=jnp.float32,
                      precision=mxu_precision)
        if use_bias:
            acc = acc + b_ref[...].astype(jnp.float32)   # (C_out, 1) broadcast
        o_ref[0] = acc.astype(o_ref.dtype)

    return kernel


@functools.partial(jax.jit, static_argnames=("padding", "dilation"))
def conv2d_nchw(x, weight, bias=None, *, padding=0, dilation=1):
    """Pallas equivalent of the PyTorch `Conv` module forward (stride=1).

    x:      (B, C_in, H, W)      NCHW, like the PyTorch module
    weight: (C_out, C_in, KH, KW)
    bias:   (C_out,) or None
    """
    b, c_in, h, w = x.shape
    c_out, c_in_w, kh, kw = weight.shape
    assert c_in == c_in_w, "grouped conv not supported (module uses groups=1)"
    p, d = padding, dilation

    h_pad, w_pad = h + 2 * p, w + 2 * p
    h_out = h_pad - d * (kh - 1)
    w_out = w_pad - d * (kw - 1)
    assert h_out > 0 and w_out > 0, "kernel/dilation too large for input"

    n_taps = kh * kw
    k_dim = n_taps * c_in
    l_out = h_out * w_pad                          # valid wide-output length
    halo = d * (kh - 1) * w_pad + d * (kw - 1)     # extra input lanes per band
    use_stack = n_taps > 1

    in_bytes = jnp.dtype(x.dtype).itemsize
    out_bytes = in_bytes

    # --- band (lane-tile) sizing: bound per-step VMEM, keep lanes % 128 == 0
    bytes_per_lane = (c_in * in_bytes * (2 + (n_taps if use_stack else 0))
                      + c_out * (2 * out_bytes + 4))
    budget = _band_budget_bytes()
    max_lanes = max(128, (budget // bytes_per_lane) // 128 * 128)
    l_tile = min(_round_up(l_out, 128), max_lanes)
    n_bands = -(-l_out // l_tile)
    if b * n_bands < 2 and l_out > 128:
        # Give the grid at least 2 steps so both v7x TensorCores get work.
        l_tile = _round_up(-(-l_out // 2), 128)
        n_bands = -(-l_out // l_tile)
    l_band_in = _round_up(l_tile + halo, 128)
    l_wide = n_bands * l_tile
    l_in = (n_bands - 1) * l_tile + l_band_in      # flattened, padded length

    # --- layout glue in XLA (pads / reshapes only, no transposes of x) ------
    x_pad = jnp.pad(x, ((0, 0), (0, 0), (p, p), (p, p))) if p else x
    x_flat = x_pad.reshape(b, c_in, h_pad * w_pad)
    x_flat = jnp.pad(x_flat, ((0, 0), (0, 0), (0, l_in - h_pad * w_pad)))

    # weight (C_out, C_in, KH, KW) -> (C_out, KH*KW*C_in), tap-major/cin-minor
    w2 = jnp.transpose(weight, (0, 2, 3, 1)).reshape(c_out, k_dim)
    offsets = tuple(ih * d * w_pad + iw * d
                    for ih in range(kh) for iw in range(kw))

    use_bias = bias is not None
    mxu_precision = (lax.Precision.HIGHEST
                     if (x.dtype == jnp.float32 and weight.dtype == jnp.float32)
                     else None)

    kernel = _make_conv_kernel(offsets, c_in, c_out, l_tile, l_band_in,
                               use_bias, use_stack, mxu_precision)

    in_specs = [pl.BlockSpec(memory_space=pl.ANY),                 # x stays in HBM
                pl.BlockSpec((c_out, k_dim), lambda i, j: (0, 0))]
    args = [x_flat, w2]
    if use_bias:
        in_specs.append(pl.BlockSpec((c_out, 1), lambda i, j: (0, 0)))
        args.append(bias.reshape(c_out, 1))

    scratch = [pltpu.VMEM((2, c_in, l_band_in), x.dtype)]
    if use_stack:
        scratch.append(pltpu.VMEM((k_dim, l_tile), x.dtype))
    scratch.append(pltpu.SemaphoreType.DMA((2,)))

    # --- VMEM limit (generation-aware headroom) -----------------------------
    est_vmem = (2 * c_in * l_band_in * in_bytes
                + (k_dim * l_tile * in_bytes if use_stack else 0)
                + 2 * c_out * l_tile * out_bytes          # pipelined out block
                + c_out * l_tile * 4                      # f32 matmul result
                + 2 * c_out * k_dim * in_bytes)
    cap = (100 << 20) if budget > (16 << 20) else (48 << 20)
    vmem_limit = int(min(cap, max(32 << 20, est_vmem * 2 + (8 << 20))))
    vmem_limit = int(max(vmem_limit, est_vmem + (2 << 20)))

    cost = pl.CostEstimate(
        flops=int(2 * b * c_out * k_dim * h_out * w_out),
        transcendentals=0,
        bytes_accessed=int(x_flat.size * in_bytes + w2.size * in_bytes
                           + b * c_out * l_wide * out_bytes))

    y_wide = pl.pallas_call(
        kernel,
        out_shape=jax.ShapeDtypeStruct((b, c_out, l_wide), x.dtype),
        grid_spec=pltpu.PrefetchScalarGridSpec(
            num_scalar_prefetch=0,
            grid=(b, n_bands),
            in_specs=in_specs,
            out_specs=pl.BlockSpec((1, c_out, l_tile), lambda i, j: (i, 0, j)),
            scratch_shapes=scratch),
        compiler_params=pltpu.CompilerParams(
            dimension_semantics=("parallel", "arbitrary"),
            vmem_limit_bytes=vmem_limit),
        cost_estimate=cost,
    )(*args)

    # Drop the invalid wide columns (row wrap-around + lane-rounding padding).
    y = y_wide[:, :, :l_out].reshape(b, c_out, h_out, w_pad)[:, :, :, :w_out]
    return y


def _reference_conv(x, weight, bias, padding, dilation):
    """Pure-JAX reference matching nn.Conv2d(stride=1) semantics."""
    out = lax.conv_general_dilated(
        x, weight,
        window_strides=(1, 1),
        padding=((padding, padding), (padding, padding)),
        rhs_dilation=(dilation, dilation),
        dimension_numbers=("NCHW", "OIHW", "NCHW"),
        precision=lax.Precision.HIGHEST,
    )
    if bias is not None:
        out = out + bias.reshape(1, -1, 1, 1)
    return out


if __name__ == "__main__":
    key = jax.random.PRNGKey(0)
    B, H, W = 2, 16, 16
    # (c_in, c_out, kernel, padding, dilation, use_bias)
    configs = [
        (4, 8, 3, 1, 1, True),    # typical 3x3 "same" conv with bias
        (4, 6, 1, 0, 1, True),    # 1x1 pointwise conv
        (4, 4, 3, 2, 2, False),   # dilated 3x3, no bias
    ]

    ok = True
    for (c_in, c_out, k, p, d, ub) in configs:
        key, kx, kw_, kb = jax.random.split(key, 4)
        x = jax.random.normal(kx, (B, c_in, H, W), dtype=jnp.float32)
        weight = 0.1 * jax.random.normal(kw_, (c_out, c_in, k, k),
                                         dtype=jnp.float32)
        bias = (0.1 * jax.random.normal(kb, (c_out,), dtype=jnp.float32)
                if ub else None)

        out = conv2d_nchw(x, weight, bias, padding=p, dilation=d)
        out = jax.block_until_ready(out)
        ref = _reference_conv(x, weight, bias, p, d)

        err = float(jnp.max(jnp.abs(out - ref)))
        if out.shape != ref.shape or not (err < 1e-4):
            ok = False
            print(f"config (cin={c_in}, cout={c_out}, k={k}, p={p}, d={d}, "
                  f"bias={ub}): FAILED max_abs_err={err} "
                  f"shape={out.shape} vs {ref.shape}")

    if ok:
        print("KERNEL_OK")
</pallas_src>

<mosaic_0001>
module attributes {stable_mosaic.version = 11 : i64} {
  func.func @kernel(%arg0: i32, %arg1: i32, %arg2: memref<2x4x512xf32, #tpu.memory_space<any>>, %arg3: memref<8x36xf32, #tpu.memory_space<vmem>>, %arg4: memref<8x1xf32, #tpu.memory_space<vmem>>, %arg5: memref<1x8x384xf32, #tpu.memory_space<vmem>>, %arg6: memref<2x4x512xf32, #tpu.memory_space<vmem>>, %arg7: memref<36x384xf32, #tpu.memory_space<vmem>>, %arg8: memref<2x!tpu.dma_semaphore, #tpu.memory_space<semaphore_mem>>) attributes {dimension_semantics = [#tpu.dimension_semantics<parallel>, #tpu.dimension_semantics<arbitrary>], iteration_bounds = array<i64: 2, 1>, scalar_prefetch = 0 : i64, scratch_operands = 3 : i64, tpu.core_type = #tpu.core_type<tc>, window_params = [{}, {pipeline_mode = #tpu.pipeline_mode<synchronous>, transform_indices = @transform_1, window_bounds = array<i64: 8, 36>}, {pipeline_mode = #tpu.pipeline_mode<synchronous>, transform_indices = @transform_2, window_bounds = array<i64: 8, 1>}, {transform_indices = @transform_3, window_bounds = array<i64: 1, 8, 384>}]} {
    %c2_i32 = arith.constant 2 : i32
    %c0_i32 = arith.constant 0 : i32
    %0 = arith.cmpi eq, %c2_i32, %c0_i32 : i32
    %c1_i32 = arith.constant 1 : i32
    %1 = arith.select %0, %c1_i32, %c2_i32 : i32
    %2 = arith.remsi %arg1, %1 : i32
    %c0_i32_0 = arith.constant 0 : i32
    %3 = arith.cmpi ne, %2, %c0_i32_0 : i32
    %c0_i32_1 = arith.constant 0 : i32
    %4 = arith.cmpi slt, %2, %c0_i32_1 : i32
    %c0_i32_2 = arith.constant 0 : i32
    %5 = arith.cmpi slt, %1, %c0_i32_2 : i32
    %6 = arith.xori %4, %5 : i1
    %7 = arith.andi %6, %3 : i1
    %8 = arith.addi %2, %1 : i32
    %9 = arith.select %7, %8, %2 : i32
    %c0_i32_3 = arith.constant 0 : i32
    %10 = arith.cmpi eq, %arg1, %c0_i32_3 : i32
    %11 = arith.extui %10 : i1 to i32
    %c0_i32_4 = arith.constant 0 : i32
    %12 = arith.cmpi ne, %11, %c0_i32_4 : i32
    scf.if %12 {
      %c384_i32_40 = arith.constant 384 : i32
      %70 = arith.muli %arg1, %c384_i32_40 : i32
      %71 = tpu.assume_multiple %70, 128 : i32
      %c0_i32_41 = arith.constant 0 : i32
      %72 = tpu.memref_slice %arg2[%arg0, %c0_i32_41, %71] : memref<2x4x512xf32, #tpu.memory_space<any>> -> memref<1x4x512xf32, #tpu.memory_space<any>>
      %73 = tpu.memref_squeeze %72 : memref<1x4x512xf32, #tpu.memory_space<any>> -> memref<4x512xf32, #tpu.memory_space<any>>
      %c0_i32_42 = arith.constant 0 : i32
      %c0_i32_43 = arith.constant 0 : i32
      %74 = tpu.memref_slice %arg6[%9, %c0_i32_42, %c0_i32_43] : memref<2x4x512xf32, #tpu.memory_space<vmem>> -> memref<1x4x512xf32, #tpu.memory_space<vmem>>
      %75 = tpu.memref_squeeze %74 : memref<1x4x512xf32, #tpu.memory_space<vmem>> -> memref<4x512xf32, #tpu.memory_space<vmem>>
      %76 = tpu.memref_slice %arg8[%9] : memref<2x!tpu.dma_semaphore, #tpu.memory_space<semaphore_mem>> -> memref<1x!tpu.dma_semaphore, #tpu.memory_space<semaphore_mem>>
      %77 = tpu.memref_squeeze %76 : memref<1x!tpu.dma_semaphore, #tpu.memory_space<semaphore_mem>> -> memref<!tpu.dma_semaphore, #tpu.memory_space<semaphore_mem>>
      tpu.enqueue_dma source(%73 : memref<4x512xf32, #tpu.memory_space<any>>) target(%75 : memref<4x512xf32, #tpu.memory_space<vmem>>) target_semaphore(%77 : memref<!tpu.dma_semaphore, #tpu.memory_space<semaphore_mem>>)
    } else {
    }
    %c1_i32_5 = arith.constant 1 : i32
    %13 = arith.addi %arg1, %c1_i32_5 : i32
    %c1_i32_6 = arith.constant 1 : i32
    %14 = arith.cmpi slt, %13, %c1_i32_6 : i32
    %15 = arith.extui %14 : i1 to i32
    %c0_i32_7 = arith.constant 0 : i32
    %16 = arith.cmpi ne, %15, %c0_i32_7 : i32
    scf.if %16 {
      %c1_i32_40 = arith.constant 1 : i32
      %70 = arith.addi %arg1, %c1_i32_40 : i32
      %c1_i32_41 = arith.constant 1 : i32
      %71 = arith.subi %c1_i32_41, %9 : i32
      %c384_i32_42 = arith.constant 384 : i32
      %72 = arith.muli %70, %c384_i32_42 : i32
      %73 = tpu.assume_multiple %72, 128 : i32
      %c0_i32_43 = arith.constant 0 : i32
      %74 = tpu.memref_slice %arg2[%arg0, %c0_i32_43, %73] : memref<2x4x512xf32, #tpu.memory_space<any>> -> memref<1x4x512xf32, #tpu.memory_space<any>>
      %75 = tpu.memref_squeeze %74 : memref<1x4x512xf32, #tpu.memory_space<any>> -> memref<4x512xf32, #tpu.memory_space<any>>
      %c0_i32_44 = arith.constant 0 : i32
      %c0_i32_45 = arith.constant 0 : i32
      %76 = tpu.memref_slice %arg6[%71, %c0_i32_44, %c0_i32_45] : memref<2x4x512xf32, #tpu.memory_space<vmem>> -> memref<1x4x512xf32, #tpu.memory_space<vmem>>
      %77 = tpu.memref_squeeze %76 : memref<1x4x512xf32, #tpu.memory_space<vmem>> -> memref<4x512xf32, #tpu.memory_space<vmem>>
      %78 = tpu.memref_slice %arg8[%71] : memref<2x!tpu.dma_semaphore, #tpu.memory_space<semaphore_mem>> -> memref<1x!tpu.dma_semaphore, #tpu.memory_space<semaphore_mem>>
      %79 = tpu.memref_squeeze %78 : memref<1x!tpu.dma_semaphore, #tpu.memory_space<semaphore_mem>> -> memref<!tpu.dma_semaphore, #tpu.memory_space<semaphore_mem>>
      tpu.enqueue_dma source(%75 : memref<4x512xf32, #tpu.memory_space<any>>) target(%77 : memref<4x512xf32, #tpu.memory_space<vmem>>) target_semaphore(%79 : memref<!tpu.dma_semaphore, #tpu.memory_space<semaphore_mem>>)
    } else {
    }
    %c384_i32 = arith.constant 384 : i32
    %17 = arith.muli %arg1, %c384_i32 : i32
    %18 = tpu.assume_multiple %17, 128 : i32
    %c0_i32_8 = arith.constant 0 : i32
    %19 = tpu.memref_slice %arg2[%arg0, %c0_i32_8, %18] : memref<2x4x512xf32, #tpu.memory_space<any>> -> memref<1x4x512xf32, #tpu.memory_space<any>>
    %20 = tpu.memref_squeeze %19 : memref<1x4x512xf32, #tpu.memory_space<any>> -> memref<4x512xf32, #tpu.memory_space<any>>
    %c0_i32_9 = arith.constant 0 : i32
    %c0_i32_10 = arith.constant 0 : i32
    %21 = tpu.memref_slice %arg6[%9, %c0_i32_9, %c0_i32_10] : memref<2x4x512xf32, #tpu.memory_space<vmem>> -> memref<1x4x512xf32, #tpu.memory_space<vmem>>
    %22 = tpu.memref_squeeze %21 : memref<1x4x512xf32, #tpu.memory_space<vmem>> -> memref<4x512xf32, #tpu.memory_space<vmem>>
    %23 = tpu.memref_slice %arg8[%9] : memref<2x!tpu.dma_semaphore, #tpu.memory_space<semaphore_mem>> -> memref<1x!tpu.dma_semaphore, #tpu.memory_space<semaphore_mem>>
    %24 = tpu.memref_squeeze %23 : memref<1x!tpu.dma_semaphore, #tpu.memory_space<semaphore_mem>> -> memref<!tpu.dma_semaphore, #tpu.memory_space<semaphore_mem>>
    tpu.wait_dma2 semaphore(%24 : memref<!tpu.dma_semaphore, #tpu.memory_space<semaphore_mem>>) src(%20 : memref<4x512xf32, #tpu.memory_space<any>>) dst(%22 : memref<4x512xf32, #tpu.memory_space<vmem>>)
    %25 = arith.index_cast %9 : i32 to index
    %c0 = arith.constant 0 : index
    %c0_11 = arith.constant 0 : index
    %26 = vector.load %arg6[%25, %c0, %c0_11] : memref<2x4x512xf32, #tpu.memory_space<vmem>>, vector<1x4x384xf32>
    %27 = vector.shape_cast %26 : vector<1x4x384xf32> to vector<4x384xf32>
    %c0_12 = arith.constant 0 : index
    %c0_13 = arith.constant 0 : index
    %28 = vector.load %arg7[%c0_12, %c0_13] : memref<36x384xf32, #tpu.memory_space<vmem>>, vector<4x384xf32>
    tpu.vector_store %arg7[%c0_12, %c0_13], %27 {strides = array<i32>} : memref<36x384xf32, #tpu.memory_space<vmem>>, vector<4x384xf32>,
    %29 = arith.index_cast %9 : i32 to index
    %c0_14 = arith.constant 0 : index
    %c1 = arith.constant 1 : index
    %30 = vector.load %arg6[%29, %c0_14, %c1] : memref<2x4x512xf32, #tpu.memory_space<vmem>>, vector<1x4x384xf32>
    %31 = vector.shape_cast %30 : vector<1x4x384xf32> to vector<4x384xf32>
    %c4 = arith.constant 4 : index
    %c0_15 = arith.constant 0 : index
    %32 = vector.load %arg7[%c4, %c0_15] : memref<36x384xf32, #tpu.memory_space<vmem>>, vector<4x384xf32>
    tpu.vector_store %arg7[%c4, %c0_15], %31 {strides = array<i32>} : memref<36x384xf32, #tpu.memory_space<vmem>>, vector<4x384xf32>,
    %33 = arith.index_cast %9 : i32 to index
    %c0_16 = arith.constant 0 : index
    %c2 = arith.constant 2 : index
    %34 = vector.load %arg6[%33, %c0_16, %c2] : memref<2x4x512xf32, #tpu.memory_space<vmem>>, vector<1x4x384xf32>
    %35 = vector.shape_cast %34 : vector<1x4x384xf32> to vector<4x384xf32>
    %c8 = arith.constant 8 : index
    %c0_17 = arith.constant 0 : index
    %36 = vector.load %arg7[%c8, %c0_17] : memref<36x384xf32, #tpu.memory_space<vmem>>, vector<4x384xf32>
    tpu.vector_store %arg7[%c8, %c0_17], %35 {strides = array<i32>} : memref<36x384xf32, #tpu.memory_space<vmem>>, vector<4x384xf32>,
    %37 = arith.index_cast %9 : i32 to index
    %c0_18 = arith.constant 0 : index
    %c18 = arith.constant 18 : index
    %38 = vector.load %arg6[%37, %c0_18, %c18] : memref<2x4x512xf32, #tpu.memory_space<vmem>>, vector<1x4x384xf32>
    %39 = vector.shape_cast %38 : vector<1x4x384xf32> to vector<4x384xf32>
    %c12 = arith.constant 12 : index
    %c0_19 = arith.constant 0 : index
    %40 = vector.load %arg7[%c12, %c0_19] : memref<36x384xf32, #tpu.memory_space<vmem>>, vector<4x384xf32>
    tpu.vector_store %arg7[%c12, %c0_19], %39 {strides = array<i32>} : memref<36x384xf32, #tpu.memory_space<vmem>>, vector<4x384xf32>,
    %41 = arith.index_cast %9 : i32 to index
    %c0_20 = arith.constant 0 : index
    %c19 = arith.constant 19 : index
    %42 = vector.load %arg6[%41, %c0_20, %c19] : memref<2x4x512xf32, #tpu.memory_space<vmem>>, vector<1x4x384xf32>
    %43 = vector.shape_cast %42 : vector<1x4x384xf32> to vector<4x384xf32>
    %c16 = arith.constant 16 : index
    %c0_21 = arith.constant 0 : index
    %44 = vector.load %arg7[%c16, %c0_21] : memref<36x384xf32, #tpu.memory_space<vmem>>, vector<4x384xf32>
    tpu.vector_store %arg7[%c16, %c0_21], %43 {strides = array<i32>} : memref<36x384xf32, #tpu.memory_space<vmem>>, vector<4x384xf32>,
    %45 = arith.index_cast %9 : i32 to index
    %c0_22 = arith.constant 0 : index
    %c20 = arith.constant 20 : index
    %46 = vector.load %arg6[%45, %c0_22, %c20] : memref<2x4x512xf32, #tpu.memory_space<vmem>>, vector<1x4x384xf32>
    %47 = vector.shape_cast %46 : vector<1x4x384xf32> to vector<4x384xf32>
    %c20_23 = arith.constant 20 : index
    %c0_24 = arith.constant 0 : index
    %48 = vector.load %arg7[%c20_23, %c0_24] : memref<36x384xf32, #tpu.memory_space<vmem>>, vector<4x384xf32>
    tpu.vector_store %arg7[%c20_23, %c0_24], %47 {strides = array<i32>} : memref<36x384xf32, #tpu.memory_space<vmem>>, vector<4x384xf32>,
    %49 = arith.index_cast %9 : i32 to index
    %c0_25 = arith.constant 0 : index
    %c36 = arith.constant 36 : index
    %50 = vector.load %arg6[%49, %c0_25, %c36] : memref<2x4x512xf32, #tpu.memory_space<vmem>>, vector<1x4x384xf32>
    %51 = vector.shape_cast %50 : vector<1x4x384xf32> to vector<4x384xf32>
    %c24 = arith.constant 24 : index
    %c0_26 = arith.constant 0 : index
    %52 = vector.load %arg7[%c24, %c0_26] : memref<36x384xf32, #tpu.memory_space<vmem>>, vector<4x384xf32>
    tpu.vector_store %arg7[%c24, %c0_26], %51 {strides = array<i32>} : memref<36x384xf32, #tpu.memory_space<vmem>>, vector<4x384xf32>,
    %53 = arith.index_cast %9 : i32 to index
    %c0_27 = arith.constant 0 : index
    %c37 = arith.constant 37 : index
    %54 = vector.load %arg6[%53, %c0_27, %c37] : memref<2x4x512xf32, #tpu.memory_space<vmem>>, vector<1x4x384xf32>
    %55 = vector.shape_cast %54 : vector<1x4x384xf32> to vector<4x384xf32>
    %c28 = arith.constant 28 : index
    %c0_28 = arith.constant 0 : index
    %56 = vector.load %arg7[%c28, %c0_28] : memref<36x384xf32, #tpu.memory_space<vmem>>, vector<4x384xf32>
    tpu.vector_store %arg7[%c28, %c0_28], %55 {strides = array<i32>} : memref<36x384xf32, #tpu.memory_space<vmem>>, vector<4x384xf32>,
    %57 = arith.index_cast %9 : i32 to index
    %c0_29 = arith.constant 0 : index
    %c38 = arith.constant 38 : index
    %58 = vector.load %arg6[%57, %c0_29, %c38] : memref<2x4x512xf32, #tpu.memory_space<vmem>>, vector<1x4x384xf32>
    %59 = vector.shape_cast %58 : vector<1x4x384xf32> to vector<4x384xf32>
    %c32 = arith.constant 32 : index
    %c0_30 = arith.constant 0 : index
    %60 = vector.load %arg7[%c32, %c0_30] : memref<36x384xf32, #tpu.memory_space<vmem>>, vector<4x384xf32>
    tpu.vector_store %arg7[%c32, %c0_30], %59 {strides = array<i32>} : memref<36x384xf32, #tpu.memory_space<vmem>>, vector<4x384xf32>,
    %c0_31 = arith.constant 0 : index
    %c0_32 = arith.constant 0 : index
    %61 = vector.load %arg7[%c0_31, %c0_32] : memref<36x384xf32, #tpu.memory_space<vmem>>, vector<36x384xf32>
    %c0_33 = arith.constant 0 : index
    %c0_34 = arith.constant 0 : index
    %62 = vector.load %arg3[%c0_33, %c0_34] : memref<8x36xf32, #tpu.memory_space<vmem>>, vector<8x36xf32>
    %cst = arith.constant dense<0.000000e+00> : vector<8x384xf32>
    %63 = tpu.matmul %62, %61, %cst {dimension_numbers = #tpu.dot_dimension_numbers<[1], [0], [0], [1], [0, 0, 1, 1], [], []>, precision = #tpu.contract_precision<fp32>} : vector<8x36xf32>, vector<36x384xf32>, vector<8x384xf32> -> vector<8x384xf32>
    %c0_35 = arith.constant 0 : index
    %c0_36 = arith.constant 0 : index
    %64 = vector.load %arg4[%c0_35, %c0_36] : memref<8x1xf32, #tpu.memory_space<vmem>>, vector<8x1xf32>
    %65 = vector.broadcast %64 : vector<8x1xf32> to vector<8x384xf32>
    %66 = arith.addf %63, %65 : vector<8x384xf32>
    %c0_37 = arith.constant 0 : index
    %c0_38 = arith.constant 0 : index
    %c0_39 = arith.constant 0 : index
    %67 = vector.load %arg5[%c0_37, %c0_38, %c0_39] : memref<1x8x384xf32, #tpu.memory_space<vmem>>, vector<1x8x384xf32>
    %68 = vector.shape_cast %67 : vector<1x8x384xf32> to vector<8x384xf32>
    %69 = vector.shape_cast %66 : vector<8x384xf32> to vector<1x8x384xf32>
    tpu.vector_store %arg5[%c0_37, %c0_38, %c0_39], %69 {strides = array<i32>} : memref<1x8x384xf32, #tpu.memory_space<vmem>>, vector<1x8x384xf32>,
    return
  }
  func.func @transform_1(%arg0: i32, %arg1: i32) -> (i32, i32) {
    %c0_i32 = arith.constant 0 : i32
    %c0_i32_0 = arith.constant 0 : i32
    %c0_i32_1 = arith.constant 0 : i32
    return %c0_i32, %c0_i32_0 : i32, i32
  }
  func.func @transform_2(%arg0: i32, %arg1: i32) -> (i32, i32) {
    %c0_i32 = arith.constant 0 : i32
    %c0_i32_0 = arith.constant 0 : i32
    %c0_i32_1 = arith.constant 0 : i32
    return %c0_i32, %c0_i32_0 : i32, i32
  }
  func.func @transform_3(%arg0: i32, %arg1: i32) -> (i32, i32, i32) {
    %c0_i32 = arith.constant 0 : i32
    %c0_i32_0 = arith.constant 0 : i32
    return %arg0, %c0_i32, %arg1 : i32, i32, i32
  }
}

</mosaic_0001>

<llo_original>
// kernel: conv2d_nchw.1
$region0: #{conv2d_nchw.1}
  #allocation0 [shape = 'u32[]', space=smem, size = 0x4, offset = 0x4, fixed_abs, tag = 'smem constant byte address 0x4 - core index']
  #allocation1 [shape = 'u32[144,128]{1,0:T(1,128)}', space=vmem, size = 0x12000, scoped, tag = 'internal scratch']
  #allocation2 [shape = 'f32[2,4,512]{2,1,0:T(4,128)}', space=vmem, size = 0x4000, scoped, tag = 'scratch operand']
  #allocation3 [shape = 'f32[36,384]{1,0:T(8,128)}', space=vmem, size = 0xf000, scoped, tag = 'scratch operand']
  #allocation4 [shape = 's32[2]{0}', space=sflag, size = 0x8, scoped, tag = 'scratch operand']
  #allocation5 [shape = 's32[]', space=sflag, size = 0x4, offset = 0, fixed_abs, tag = 'sflag constant byte address 0x0 - dummy sync flag']
  #allocation6 [shape = 's32[]', space=sflag, size = 0x4, offset = 0, fixed_abs, tag = 'sflag constant byte address 0x0 - dummy sync flag']
  %s0 = inlined_call_operand.vmem [shape: f32[2,4,512], index: 0, kind: input, shape index: {}]
  %s1 = inlined_call_operand.vmem [shape: f32[8,36], index: 1, kind: input, shape index: {}]
  %s2 = inlined_call_operand.vmem [shape: f32[8,1], index: 2, kind: input, shape index: {}]
  %s3 = inlined_call_operand.vmem [shape: f32[2,8,384], index: 3, kind: output, shape index: {}]
  %s4 = sld [smem:[#allocation0]]
  $region117: #{conv2d_nchw.1} parent=0
    _
  %s6 = ssub.s32 1, %s4
  %s7 = scalar_select 0, %s6, %s4
  loop: start=0, step=1, limit=4
  $region2: #{conv2d_nchw.1} parent=0 // loop_pre_header
    _
  $region3: #{conv2d_nchw.1} parent=0 // loop_header
    %s9 = sphi 0, %s13
    %p10 = scmp.ge.s32.totalorder %s9, 4
    %s16 = sphi 0, %s28
    %s17 = sphi 0, %s24
    %s18 = sphi 0, %s16
    %s19 = sphi 0, %s17
    %s20 = sphi 0, %s18
    %s21 = sphi 0, %s19
    %s29 = sphi 0, %s29
    %s31 = sphi 0, %s29
    %s32 = sphi 0, %s31
    %s46 = sphi 0, %s32
    %s50 = sphi 0, %s50
    %s52 = sphi 0, %s50
    %s53 = sphi 0, %s52
    %s67 = sphi 0, %s53
    %s75 = sphi 0, %s77
    %s78 = sphi 0, %s75
    %s79 = sphi 0, %s78
    %s95 = sphi 0, %s79
  $region4: #{conv2d_nchw.1} parent=0 // loop_header_branch
    %12 = sbr.rel (%p10) target = $region8
  $region5: #{conv2d_nchw.1} parent=0 // loop_body
    %s14 = ssub.s32 %s9, 1
    %s15 = ssub.s32 %s9, 2
    %s22 = sadd.s32 1, %s17
    %p23 = scmp.ge.s32.totalorder %s22, 1
    %s24 = scalar_select %p23, 0, %s22
    %s25 = sadd.s32 1, %s16
    %s26 = scalar_select %p23, %s25, %s16
    %p27 = scmp.ge.s32.totalorder %s26, 2
    %s28 = scalar_select %p27, 0, %s26
    %s30 = sadd.s32 %s29, 1
    %p33 = scmp.eq.s32.totalorder %s9, 1
    %p34 = scmp.ne.s32.totalorder %s29, %s31
    %p35 = scmp.eq.s32.totalorder %s9, 0
    %p36 = por %p34, %p35
    %p37 = scmp.ne.s32.totalorder %s29, %s31
    %p38 = scmp.eq.s32.totalorder %s14, 1
    %p39 = por %p37, %p38
    %p40 = scmp.ne.s32.totalorder %s31, %s32
    %p41 = scmp.eq.s32.totalorder %s14, 0
    %p42 = por %p40, %p41
    %p43 = scmp.ne.s32.totalorder %s31, %s32
    %p44 = scmp.eq.s32.totalorder %s15, 1
    %p45 = por %p43, %p44
    %p47 = scmp.ne.s32.totalorder %s32, %s46
    %p48 = scmp.eq.s32.totalorder %s15, 0
    %p49 = por %p47, %p48
    %s51 = sadd.s32 %s50, 1
    %p54 = scmp.eq.s32.totalorder %s9, 1
    %p55 = scmp.ne.s32.totalorder %s50, %s52
    %p56 = scmp.eq.s32.totalorder %s9, 0
    %p57 = por %p55, %p56
    %p58 = scmp.ne.s32.totalorder %s50, %s52
    %p59 = scmp.eq.s32.totalorder %s14, 1
    %p60 = por %p58, %p59
    %p61 = scmp.ne.s32.totalorder %s52, %s53
    %p62 = scmp.eq.s32.totalorder %s14, 0
    %p63 = por %p61, %p62
    %p64 = scmp.ne.s32.totalorder %s52, %s53
    %p65 = scmp.eq.s32.totalorder %s15, 1
    %p66 = por %p64, %p65
    %p68 = scmp.ne.s32.totalorder %s53, %s67
    %p69 = scmp.eq.s32.totalorder %s15, 0
    %p70 = por %p68, %p69
    %s71 = ssub.s32 %s16, %s28
    %s72 = ssub.s32 %s17, %s24
    %s73 = sor.u32 %s71, %s72
    %p74 = scmp.eq.s32.totalorder %s73, 0
    %s76 = sadd.s32 %s75, 1
    %s77 = scalar_select %p74, %s75, %s76
    %p80 = pneg %p74
    %p81 = scmp.eq.s32.totalorder %s9, 1
    %p82 = por %p80, %p81
    %p83 = scmp.ne.s32.totalorder %s75, %s78
    %p84 = scmp.eq.s32.totalorder %s9, 0
    %p85 = por %p83, %p84
    %p86 = scmp.ne.s32.totalorder %s75, %s78
    %p87 = scmp.eq.s32.totalorder %s14, 1
    %p88 = por %p86, %p87
    %p89 = scmp.ne.s32.totalorder %s78, %s79
    %p90 = scmp.eq.s32.totalorder %s14, 0
    %p91 = por %p89, %p90
    %p92 = scmp.ne.s32.totalorder %s78, %s79
    %p93 = scmp.eq.s32.totalorder %s15, 1
    %p94 = por %p92, %p93
    %p96 = scmp.ne.s32.totalorder %s79, %s95
    %p97 = scmp.eq.s32.totalorder %s15, 0
    %p98 = por %p96, %p97
    %p99 = scmp.le.s32.totalorder 1, %s9
    %p100 = scmp.lt.s32.totalorder %s9, 3
    %p101 = pnand %p99, %p100
    %p102 = pneg %p101
    // Predicated region
    $region9: #{conv2d_nchw.1} parent=5 // pred_check
      _
    $region10: #{conv2d_nchw.1} parent=5 // pred_check_branch
      %104 = sbr.rel (%p101) target = $region12
    $region11: #{conv2d_nchw.1} parent=5 // pred_region
      %s105 = ssub.s32 %s9, 1
      // Predicated region
      $region13: #{conv2d_nchw.1} parent=11 // pred_check
        %p106 = pneg %p42
      $region14: #{conv2d_nchw.1} parent=11 // pred_check_branch
        %108 = sbr.rel (%p106) target = $region16
      $region15: #{conv2d_nchw.1} parent=11 // pred_region
        _
      $region16: #{conv2d_nchw.1} parent=11 // pred_fallthru
        _
      // Predicated region
      $region17: #{conv2d_nchw.1} parent=11 // pred_check
        %p109 = pneg %p63
      $region18: #{conv2d_nchw.1} parent=11 // pred_check_branch
        %111 = sbr.rel (%p109) target = $region20
      $region19: #{conv2d_nchw.1} parent=11 // pred_region
        _
      $region20: #{conv2d_nchw.1} parent=11 // pred_fallthru
        _
    $region12: #{conv2d_nchw.1} parent=5 // pred_fallthru
      _
    %p112 = scmp.lt.s32.totalorder %s9, 2
    // Predicated region
    $region21: #{conv2d_nchw.1} parent=5 // pred_check
      %p113 = pneg %p112
    $region22: #{conv2d_nchw.1} parent=5 // pred_check_branch
      %115 = sbr.rel (%p113) target = $region24
    $region23: #{conv2d_nchw.1} parent=5 // pred_region
      _
    $region24: #{conv2d_nchw.1} parent=5 // pred_fallthru
      _
    %p116 = scmp.le.s32.totalorder 1, %s9
    %p117 = scmp.lt.s32.totalorder %s9, 3
    %p118 = pnand %p116, %p117
    %p119 = pneg %p118
    // Predicated region
    $region25: #{conv2d_nchw.1} parent=5 // pred_check
      _
    $region26: #{conv2d_nchw.1} parent=5 // pred_check_branch
      %121 = sbr.rel (%p118) target = $region28
    $region27: #{conv2d_nchw.1} parent=5 // pred_region
      %s122 = ssub.s32 %s9, 1
      %p123 = pneg %p42
      %p124 = pneg %p39
      %p125 = pneg %p63
      %p126 = pneg %p60
      %p127 = pneg %p91
      %p128 = pneg %p88
      %s129 = smul.u32 3, %s19
      %p130 = scmp.lt.s32.totalorder %s18, 1
      %s131 = scalar_select %p130, %s18, 1
      %p132 = scmp.lt.s32.totalorder %s129, 2
      %s133 = scalar_select %p132, %s129, 2
      %s134 = smul.addr %s131, 3
      %s135 = sadd.s32 %s133, %s134
      %s136 = smul.addr %s135, 8
      %s137 = scalar_lea.vmem %s3, %s136
      %s138 = smul.u32 3, %s19
      %p139 = scmp.lt.s32.totalorder %s18, 1
      %s140 = scalar_select %p139, %s18, 1
      %p141 = scmp.lt.s32.totalorder %s138, 2
      %s142 = scalar_select %p141, %s138, 2
      %s143 = smul.addr %s140, 3
      %s144 = sadd.s32 %s142, %s143
      %s145 = smul.addr %s144, 8
      %s146 = scalar_lea.vmem %s3, %s145
      %s147 = smul.u32 3, %s19
      %p148 = scmp.lt.s32.totalorder %s19, 0
      %s149 = ssub.s32 0, %s19
      %s150 = scalar_select %p148, %s149, %s19
      %s151 = sand.u32 %s150, 1
      %s152 = ssub.s32 0, %s151
      %s153 = scalar_select %p148, %s152, %s151
      %p154 = scmp.ne.s32.totalorder %s153, 0
      %p155 = scmp.lt.s32.totalorder %s153, 0
      %p156 = pnand %p155, %p154
      %p157 = pneg %p156
      %s158 = sadd.s32 %s153, 2
      %s159 = scalar_select %p157, %s158, %s153
      %p160 = scmp.eq.s32.totalorder %s19, 0
      // Predicated region
      $region29: #{conv2d_nchw.1} parent=27 // pred_check
        %p161 = pneg %p160
      $region30: #{conv2d_nchw.1} parent=27 // pred_check_branch
        %163 = sbr.rel (%p161) target = $region32
      $region31: #{conv2d_nchw.1} parent=27 // pred_region
        %s164 = smul.u32 %s19, 384
        %s165 = sshra.s32 %s164, 7
        %s166 = sand.u32 %s164, 127
        %s167 = smul.u32 %s18, 4
        %s168 = sadd.s32 %s165, %s167
        %s169 = smul.addr %s168, 4
        %s170 = scalar_lea.vmem %s0, %s169
        %s171 = smul.u32 %s159, 4
        %s172 = smul.addr %s171, 4
        %s173 = scalar_lea.vmem [#allocation2], %s172
        %s174 = scalar_lea.sflag [#allocation4], %s159
        %p176 = scmp.lt.u32.totalorder 16, 8
        %p177 = pneg %p176
        // Predicated region
        $region33: #{conv2d_nchw.1} parent=31 // pred_check
          _
        $region34: #{conv2d_nchw.1} parent=31 // pred_check_branch
          %179 = sbr.rel (%p176) target = $region36
        $region35: #{conv2d_nchw.1} parent=31 // pred_region
          %s194 = sand.u32 16, 7
          %p195 = scmp.eq.s32.totalorder %s194, 0
          // Predicated region
          $region48: #{conv2d_nchw.1} parent=35 // pred_check
            %p196 = pneg %p195
          $region49: #{conv2d_nchw.1} parent=35 // pred_check_branch
            %198 = sbr.rel (%p196) target = $region51
          $region50: #{conv2d_nchw.1} parent=35 // pred_region
            loop: start=0, step=1, limit=1
            $region52: #{conv2d_nchw.1} parent=50 // loop_pre_header
              _
            $region53: #{conv2d_nchw.1} parent=50 // loop_header
              %s200 = sphi 0, %s204
              %p201 = scmp.ge.s32.totalorder %s200, 1
              %s205 = sphi %s170, %s170
              %s206 = sphi %s173, %s173
            $region54: #{conv2d_nchw.1} parent=50 // loop_header_branch
              %203 = sbr.rel (%p201) target = $region58
            $region55: #{conv2d_nchw.1} parent=50 // loop_body
              %v207 = vld [vmem:[%s205] sm:$0xff]
              %208 = vst [vmem:[%s206] sm:$0xff] %v207
              %v209 = vld [vmem:[%s205 + $0x8] sm:$0xff]
              %210 = vst [vmem:[%s206 + $0x8] sm:$0xff] %v209
            $region56: #{conv2d_nchw.1} parent=50 // loop_footer
              %s204 = sadd.s32 1, %s200
            $region57: #{conv2d_nchw.1} parent=50 // loop_footer_branch
              %199 = sbr.rel target = $region53
            $region58: #{conv2d_nchw.1} parent=50 // loop_exit
              _
          $region51: #{conv2d_nchw.1} parent=35 // pred_fallthru
            _
          %p211 = pneg %p195
          // Predicated region
          $region59: #{conv2d_nchw.1} parent=35 // pred_check
            _
          $region60: #{conv2d_nchw.1} parent=35 // pred_check_branch
            %213 = sbr.rel (%p195) target = $region62
          $region61: #{conv2d_nchw.1} parent=35 // pred_region
            %s214 = sand.u32 16, 7
          $region62: #{conv2d_nchw.1} parent=35 // pred_fallthru
            _
        $region36: #{conv2d_nchw.1} parent=31 // pred_fallthru
          _
        // Predicated region
        $region37: #{conv2d_nchw.1} parent=31 // pred_check
          %p180 = pneg %p176
        $region38: #{conv2d_nchw.1} parent=31 // pred_check_branch
          %182 = sbr.rel (%p180) target = $region40
        $region39: #{conv2d_nchw.1} parent=31 // pred_region
          %s183 = sshllo.u32 0, 16
          loop: start=0, step=1, limit=1
          $region41: #{conv2d_nchw.1} parent=39 // loop_pre_header
            _
          $region42: #{conv2d_nchw.1} parent=39 // loop_header
            %s185 = sphi 0, %s189
            %p186 = scmp.ge.s32.totalorder %s185, 1
            %s190 = sphi %s170, %s170
            %s191 = sphi %s173, %s173
          $region43: #{conv2d_nchw.1} parent=39 // loop_header_branch
            %188 = sbr.rel (%p186) target = $region47
          $region44: #{conv2d_nchw.1} parent=39 // loop_body
            %v192 = vld [vmem:[%s190] sm:%s183]
            %193 = vst [vmem:[%s191] sm:%s183] %v192
          $region45: #{conv2d_nchw.1} parent=39 // loop_footer
            %s189 = sadd.s32 1, %s185
          $region46: #{conv2d_nchw.1} parent=39 // loop_footer_branch
            %184 = sbr.rel target = $region42
          $region47: #{conv2d_nchw.1} parent=39 // loop_exit
            _
        $region40: #{conv2d_nchw.1} parent=31 // pred_fallthru
          _
        // Predicated region
        $region63: #{conv2d_nchw.1} parent=31 // pred_check
          _
        $region64: #{conv2d_nchw.1} parent=31 // pred_check_branch
          %217 = sbr.rel (0) target = $region66
        $region65: #{conv2d_nchw.1} parent=31 // pred_region
          %218 = vsyncadd %s174, 256
        $region66: #{conv2d_nchw.1} parent=31 // pred_fallthru
          _
      $region32: #{conv2d_nchw.1} parent=27 // pred_fallthru
        _
      %s219 = sadd.s32 %s19, 1
      %p220 = scmp.lt.s32.totalorder %s219, 1
      // Predicated region
      $region67: #{conv2d_nchw.1} parent=27 // pred_check
        %p221 = pneg %p220
      $region68: #{conv2d_nchw.1} parent=27 // pred_check_branch
        %223 = sbr.rel (%p221) target = $region70
      $region69: #{conv2d_nchw.1} parent=27 // pred_region
        %s224 = ssub.s32 1, %s159
        %s225 = smul.u32 %s219, 384
        %s226 = sshra.s32 %s225, 7
        %s227 = sand.u32 %s225, 127
        %s228 = smul.u32 %s18, 4
        %s229 = sadd.s32 %s226, %s228
        %s230 = smul.addr %s229, 4
        %s231 = scalar_lea.vmem %s0, %s230
        %s232 = smul.u32 %s224, 4
        %s233 = smul.addr %s232, 4
        %s234 = scalar_lea.vmem [#allocation2], %s233
        %s235 = scalar_lea.sflag [#allocation4], %s224
        %p237 = scmp.lt.u32.totalorder 16, 8
        %p238 = pneg %p237
        // Predicated region
        $region71: #{conv2d_nchw.1} parent=69 // pred_check
          _
        $region72: #{conv2d_nchw.1} parent=69 // pred_check_branch
          %240 = sbr.rel (%p237) target = $region74
        $region73: #{conv2d_nchw.1} parent=69 // pred_region
          %s255 = sand.u32 16, 7
          %p256 = scmp.eq.s32.totalorder %s255, 0
          // Predicated region
          $region86: #{conv2d_nchw.1} parent=73 // pred_check
            %p257 = pneg %p256
          $region87: #{conv2d_nchw.1} parent=73 // pred_check_branch
            %259 = sbr.rel (%p257) target = $region89
          $region88: #{conv2d_nchw.1} parent=73 // pred_region
            loop: start=0, step=1, limit=1
            $region90: #{conv2d_nchw.1} parent=88 // loop_pre_header
              _
            $region91: #{conv2d_nchw.1} parent=88 // loop_header
              %s261 = sphi 0, %s265
              %p262 = scmp.ge.s32.totalorder %s261, 1
              %s266 = sphi %s231, %s231
              %s267 = sphi %s234, %s234
            $region92: #{conv2d_nchw.1} parent=88 // loop_header_branch
              %264 = sbr.rel (%p262) target = $region96
            $region93: #{conv2d_nchw.1} parent=88 // loop_body
              %v268 = vld [vmem:[%s266] sm:$0xff]
              %269 = vst [vmem:[%s267] sm:$0xff] %v268
              %v270 = vld [vmem:[%s266 + $0x8] sm:$0xff]
              %271 = vst [vmem:[%s267 + $0x8] sm:$0xff] %v270
            $region94: #{conv2d_nchw.1} parent=88 // loop_footer
              %s265 = sadd.s32 1, %s261
            $region95: #{conv2d_nchw.1} parent=88 // loop_footer_branch
              %260 = sbr.rel target = $region91
            $region96: #{conv2d_nchw.1} parent=88 // loop_exit
              _
          $region89: #{conv2d_nchw.1} parent=73 // pred_fallthru
            _
          %p272 = pneg %p256
          // Predicated region
          $region97: #{conv2d_nchw.1} parent=73 // pred_check
            _
          $region98: #{conv2d_nchw.1} parent=73 // pred_check_branch
            %274 = sbr.rel (%p256) target = $region100
          $region99: #{conv2d_nchw.1} parent=73 // pred_region
            %s275 = sand.u32 16, 7
          $region100: #{conv2d_nchw.1} parent=73 // pred_fallthru
            _
        $region74: #{conv2d_nchw.1} parent=69 // pred_fallthru
          _
        // Predicated region
        $region75: #{conv2d_nchw.1} parent=69 // pred_check
          %p241 = pneg %p237
        $region76: #{conv2d_nchw.1} parent=69 // pred_check_branch
          %243 = sbr.rel (%p241) target = $region78
        $region77: #{conv2d_nchw.1} parent=69 // pred_region
          %s244 = sshllo.u32 0, 16
          loop: start=0, step=1, limit=1
          $region79: #{conv2d_nchw.1} parent=77 // loop_pre_header
            _
          $region80: #{conv2d_nchw.1} parent=77 // loop_header
            %s246 = sphi 0, %s250
            %p247 = scmp.ge.s32.totalorder %s246, 1
            %s251 = sphi %s231, %s231
            %s252 = sphi %s234, %s234
          $region81: #{conv2d_nchw.1} parent=77 // loop_header_branch
            %249 = sbr.rel (%p247) target = $region85
          $region82: #{conv2d_nchw.1} parent=77 // loop_body
            %v253 = vld [vmem:[%s251] sm:%s244]
            %254 = vst [vmem:[%s252] sm:%s244] %v253
          $region83: #{conv2d_nchw.1} parent=77 // loop_footer
            %s250 = sadd.s32 1, %s246
          $region84: #{conv2d_nchw.1} parent=77 // loop_footer_branch
            %245 = sbr.rel target = $region80
          $region85: #{conv2d_nchw.1} parent=77 // loop_exit
            _
        $region78: #{conv2d_nchw.1} parent=69 // pred_fallthru
          _
        // Predicated region
        $region101: #{conv2d_nchw.1} parent=69 // pred_check
          _
        $region102: #{conv2d_nchw.1} parent=69 // pred_check_branch
          %278 = sbr.rel (0) target = $region104
        $region103: #{conv2d_nchw.1} parent=69 // pred_region
          %279 = vsyncadd %s235, 256
        $region104: #{conv2d_nchw.1} parent=69 // pred_fallthru
          _
      $region70: #{conv2d_nchw.1} parent=27 // pred_fallthru
        _
      %s280 = smul.u32 %s19, 384
      %s281 = smul.u32 %s159, 4
      %s282 = smul.addr %s281, 4
      %s283 = scalar_lea.vmem [#allocation2], %s282
      %s284 = scalar_lea.sflag [#allocation4], %s159
      %s285 = smul.u32 4, 1
      %s286 = smul.u32 %s285, 4
      %s287 = sshll.u32 %s286, 4
      %288 = dma.done %s284, %s287
      %v289 = vld [vmem:[%s283] sm:$0xff]
      %v290 = vld [vmem:[%s283 + $0x8] sm:$0xf]
      %v292 = vcombine.high %v289, %v289
      %294 = vst [vmem:[#allocation3] sm:$0xf] %v289
      %295 = vst [vmem:[#allocation3 + $0x8] sm:$0xf] %v292
      %296 = vst [vmem:[#allocation3 + $0x10] sm:$0xf] %v290
      %v297 = vld [vmem:[%s283] sm:$0xff]
      %v298 = vld [vmem:[%s283 + $0x8] sm:$0xff]
      %v301 = vcombine.low %v297, %v297
      %v302 = vcombine.low %v298, %v298
      %303 = vrot.lane.b32.xlu0 %v301, 127
      %v304 = vpop.permute.xlu0 %303
      %305 = vrot.lane.b32.xlu0 %v297, 127
      %v306 = vpop.permute.xlu0 %305
      %307 = vrot.lane.b32.xlu0 %v302, 127
      %v308 = vpop.permute.xlu0 %307
      %309 = vrot.lane.b32.xlu0 %v298, 127
      %v310 = vpop.permute.xlu0 %309
      %vm311 = vcmask 1039360
      %v312 = vsel %vm311, %v304, %v306
      %v313 = vsel %vm311, %v306, %v308
      %v314 = vsel %vm311, %v308, %v310
      %318 = vst [vmem:[#allocation3] sm:$0xf0] %v312
      %319 = vst [vmem:[#allocation3 + $0x8] sm:$0xf0] %v313
      %320 = vst [vmem:[#allocation3 + $0x10] sm:$0xf0] %v314
      %v321 = vld [vmem:[%s283] sm:$0xff]
      %v322 = vld [vmem:[%s283 + $0x8] sm:$0xff]
      %v325 = vcombine.high %v321, %v321
      %v326 = vcombine.high %v322, %v322
      %327 = vrot.lane.b32.xlu0 %v321, 126
      %v328 = vpop.permute.xlu0 %327
      %329 = vrot.lane.b32.xlu0 %v325, 126
      %v330 = vpop.permute.xlu0 %329
      %331 = vrot.lane.b32.xlu0 %v322, 126
      %v332 = vpop.permute.xlu0 %331
      %333 = vrot.lane.b32.xlu0 %v326, 126
      %v334 = vpop.permute.xlu0 %333
      %vm335 = vcmask 1031168
      %v336 = vsel %vm335, %v328, %v330
      %v337 = vsel %vm335, %v330, %v332
      %v338 = vsel %vm335, %v332, %v334
      %342 = vst [vmem:[#allocation3 + $0x18] sm:$0xf] %v336
      %343 = vst [vmem:[#allocation3 + $0x20] sm:$0xf] %v337
      %344 = vst [vmem:[#allocation3 + $0x28] sm:$0xf] %v338
      %v345 = vld [vmem:[%s283] sm:$0xff]
      %v346 = vld [vmem:[%s283 + $0x8] sm:$0xff]
      %v349 = vcombine.low %v345, %v345
      %v350 = vcombine.low %v346, %v346
      %351 = vrot.lane.b32.xlu0 %v349, 110
      %v352 = vpop.permute.xlu0 %351
      %353 = vrot.lane.b32.xlu0 %v345, 110
      %v354 = vpop.permute.xlu0 %353
      %355 = vrot.lane.b32.xlu0 %v350, 110
      %v356 = vpop.permute.xlu0 %355
      %357 = vrot.lane.b32.xlu0 %v346, 110
      %v358 = vpop.permute.xlu0 %357
      %vm359 = vcmask 900096
      %v360 = vsel %vm359, %v352, %v354
      %v361 = vsel %vm359, %v354, %v356
      %v362 = vsel %vm359, %v356, %v358
      %366 = vst [vmem:[#allocation3 + $0x18] sm:$0xf0] %v360
      %367 = vst [vmem:[#allocation3 + $0x20] sm:$0xf0] %v361
      %368 = vst [vmem:[#allocation3 + $0x28] sm:$0xf0] %v362
      %v369 = vld [vmem:[%s283] sm:$0xff]
      %v370 = vld [vmem:[%s283 + $0x8] sm:$0xff]
      %v373 = vcombine.high %v369, %v369
      %v374 = vcombine.high %v370, %v370
      %375 = vrot.lane.b32.xlu0 %v369, 109
      %v376 = vpop.permute.xlu0 %375
      %377 = vrot.lane.b32.xlu0 %v373, 109
      %v378 = vpop.permute.xlu0 %377
      %379 = vrot.lane.b32.xlu0 %v370, 109
      %v380 = vpop.permute.xlu0 %379
      %381 = vrot.lane.b32.xlu0 %v374, 109
      %v382 = vpop.permute.xlu0 %381
      %vm383 = vcmask 891904
      %v384 = vsel %vm383, %v376, %v378
      %v385 = vsel %vm383, %v378, %v380
      %v386 = vsel %vm383, %v380, %v382
      %390 = vst [vmem:[#allocation3 + $0x30] sm:$0xf] %v384
      %391 = vst [vmem:[#allocation3 + $0x38] sm:$0xf] %v385
      %392 = vst [vmem:[#allocation3 + $0x40] sm:$0xf] %v386
      %v393 = vld [vmem:[%s283] sm:$0xff]
      %v394 = vld [vmem:[%s283 + $0x8] sm:$0xff]
      %v397 = vcombine.low %v393, %v393
      %v398 = vcombine.low %v394, %v394
      %399 = vrot.lane.b32.xlu0 %v397, 108
      %v400 = vpop.permute.xlu0 %399
      %401 = vrot.lane.b32.xlu0 %v393, 108
      %v402 = vpop.permute.xlu0 %401
      %403 = vrot.lane.b32.xlu0 %v398, 108
      %v404 = vpop.permute.xlu0 %403
      %405 = vrot.lane.b32.xlu0 %v394, 108
      %v406 = vpop.permute.xlu0 %405
      %vm407 = vcmask 883712
      %v408 = vsel %vm407, %v400, %v402
      %v409 = vsel %vm407, %v402, %v404
      %v410 = vsel %vm407, %v404, %v406
      %414 = vst [vmem:[#allocation3 + $0x30] sm:$0xf0] %v408
      %415 = vst [vmem:[#allocation3 + $0x38] sm:$0xf0] %v409
      %416 = vst [vmem:[#allocation3 + $0x40] sm:$0xf0] %v410
      %v417 = vld [vmem:[%s283] sm:$0xff]
      %v418 = vld [vmem:[%s283 + $0x8] sm:$0xff]
      %v421 = vcombine.high %v417, %v417
      %v422 = vcombine.high %v418, %v418
      %423 = vrot.lane.b32.xlu0 %v417, 92
      %v424 = vpop.permute.xlu0 %423
      %425 = vrot.lane.b32.xlu0 %v421, 92
      %v426 = vpop.permute.xlu0 %425
      %427 = vrot.lane.b32.xlu0 %v418, 92
      %v428 = vpop.permute.xlu0 %427
      %429 = vrot.lane.b32.xlu0 %v422, 92
      %v430 = vpop.permute.xlu0 %429
      %vm431 = vcmask 752640
      %v432 = vsel %vm431, %v424, %v426
      %v433 = vsel %vm431, %v426, %v428
      %v434 = vsel %vm431, %v428, %v430
      %438 = vst [vmem:[#allocation3 + $0x48] sm:$0xf] %v432
      %439 = vst [vmem:[#allocation3 + $0x50] sm:$0xf] %v433
      %440 = vst [vmem:[#allocation3 + $0x58] sm:$0xf] %v434
      %v441 = vld [vmem:[%s283] sm:$0xff]
      %v442 = vld [vmem:[%s283 + $0x8] sm:$0xff]
      %v445 = vcombine.low %v441, %v441
      %v446 = vcombine.low %v442, %v442
      %447 = vrot.lane.b32.xlu0 %v445, 91
      %v448 = vpop.permute.xlu0 %447
      %449 = vrot.lane.b32.xlu0 %v441, 91
      %v450 = vpop.permute.xlu0 %449
      %451 = vrot.lane.b32.xlu0 %v446, 91
      %v452 = vpop.permute.xlu0 %451
      %453 = vrot.lane.b32.xlu0 %v442, 91
      %v454 = vpop.permute.xlu0 %453
      %vm455 = vcmask 744448
      %v456 = vsel %vm455, %v448, %v450
      %v457 = vsel %vm455, %v450, %v452
      %v458 = vsel %vm455, %v452, %v454
      %462 = vst [vmem:[#allocation3 + $0x48] sm:$0xf0] %v456
      %463 = vst [vmem:[#allocation3 + $0x50] sm:$0xf0] %v457
      %464 = vst [vmem:[#allocation3 + $0x58] sm:$0xf0] %v458
      %v465 = vld [vmem:[%s283] sm:$0xff]
      %v466 = vld [vmem:[%s283 + $0x8] sm:$0xff]
      %v469 = vcombine.high %v465, %v465
      %v470 = vcombine.high %v466, %v466
      %471 = vrot.lane.b32.xlu0 %v465, 90
      %v472 = vpop.permute.xlu0 %471
      %473 = vrot.lane.b32.xlu0 %v469, 90
      %v474 = vpop.permute.xlu0 %473
      %475 = vrot.lane.b32.xlu0 %v466, 90
      %v476 = vpop.permute.xlu0 %475
      %477 = vrot.lane.b32.xlu0 %v470, 90
      %v478 = vpop.permute.xlu0 %477
      %vm479 = vcmask 736256
      %v480 = vsel %vm479, %v472, %v474
      %v481 = vsel %vm479, %v474, %v476
      %v482 = vsel %vm479, %v476, %v478
      %486 = vst [vmem:[#allocation3 + $0x60] sm:$0xf] %v480
      %487 = vst [vmem:[#allocation3 + $0x68] sm:$0xf] %v481
      %488 = vst [vmem:[#allocation3 + $0x70] sm:$0xf] %v482
      %v489 = vld [vmem:[#allocation3] sm:$0xff]
      %v490 = vld [vmem:[#allocation3 + $0x8] sm:$0xff]
      %v491 = vld [vmem:[#allocation3 + $0x10] sm:$0xff]
      %v492 = vld [vmem:[#allocation3 + $0x18] sm:$0xff]
      %v493 = vld [vmem:[#allocation3 + $0x20] sm:$0xff]
      %v494 = vld [vmem:[#allocation3 + $0x28] sm:$0xff]
      %v495 = vld [vmem:[#allocation3 + $0x30] sm:$0xff]
      %v496 = vld [vmem:[#allocation3 + $0x38] sm:$0xff]
      %v497 = vld [vmem:[#allocation3 + $0x40] sm:$0xff]
      %v498 = vld [vmem:[#allocation3 + $0x48] sm:$0xff]
      %v499 = vld [vmem:[#allocation3 + $0x50] sm:$0xff]
      %v500 = vld [vmem:[#allocation3 + $0x58] sm:$0xff]
      %v501 = vld [vmem:[#allocation3 + $0x60] sm:$0xf]
      %v502 = vld [vmem:[#allocation3 + $0x68] sm:$0xf]
      %v503 = vld [vmem:[#allocation3 + $0x70] sm:$0xf]
      %v504 = vld [vmem:[%s1] sm:$0xff]
      %v505 = vld [vmem:[%s2] sm:$0xff]
      %507 = vset.pattern.permute.xlu0 0
      %508 = vperm.xlu0 %507, %v505
      %v509 = vpop.permute.xlu0 %508
      %vm511 = vcmask 293888
      %v513 = vsel %vm511, %v504, 0
      %vm515 = vcmask 1043456
      %v517 = vsel %vm515, %v501, 0
      %v520 = vsel %vm515, %v502, 0
      %v523 = vsel %vm515, %v503, 0
      %v525 = vand.u32 %v490, 4294901760
      %526 = vmatprep.subr.mxu0 %v525
      %v527 = vand.u32 %v489, 4294901760
      %528 = vmatpush1.msra.mxu0 %v527
      %v529 = vand.u32 %v493, 4294901760
      %530 = vmatprep.subr.mxu0 %v529
      %v531 = vand.u32 %v492, 4294901760
      %532 = vmatpush1.msra.mxu0 %v531
      %v533 = vand.u32 %v496, 4294901760
      %534 = vmatprep.subr.mxu0 %v533
      %v535 = vand.u32 %v495, 4294901760
      %536 = vmatpush1.msra.mxu0 %v535
      %v537 = vand.u32 %v499, 4294901760
      %538 = vmatprep.subr.mxu0 %v537
      %v539 = vand.u32 %v498, 4294901760
      %540 = vmatpush1.msra.mxu0 %v539
      %v541 = vand.u32 %v520, 4294901760
      %542 = vmatprep.subr.mxu0 %v541
      %v543 = vand.u32 %v517, 4294901760
      %544 = vmatpush1.msra.mxu0 %v543
      %545 = vmatprep.subr.mxu0 0.0
      %546 = vmatpush1.msra.mxu0 0.0
      %547 = vmatprep.subr.mxu0 0.0
      %548 = vmatpush1.msra.mxu0 0.0
      %549 = vmatprep.subr.mxu0 0.0
      %550 = vmatpush1.msra.mxu0 0.0
      %551 = vmatprep.subr.mxu0 0.0
      %552 = vmatpush1.msra.mxu0 0.0
      %553 = vmatprep.subr.mxu0 0.0
      %554 = vmatpush1.msra.mxu0 0.0
      %555 = vmatprep.subr.mxu0 0.0
      %556 = vmatpush1.msra.mxu0 0.0
      %557 = vmatprep.subr.mxu0 0.0
      %558 = vmatpush1.msra.mxu0 0.0
      %559 = vmatprep.subr.mxu0 0.0
      %560 = vmatpush1.msra.mxu0 0.0
      %561 = vmatprep.subr.mxu0 0.0
      %562 = vmatpush1.msra.mxu0 0.0
      %563 = vmatprep.subr.mxu0 0.0
      %564 = vmatpush1.msra.mxu0 0.0
      %565 = vmatprep.subr.mxu0 0.0
      %566 = vmatpush1.msra.mxu0 0.0
      %567 = vmatprep.subr.mxu0 0.0
      %568 = vmatpush1.msra.mxu0 0.0
      %569 = vmatprep.subr.mxu0 0.0
      %570 = vmatpush1.msra.mxu0 0.0
      %571 = vmatprep.subr.mxu0 0.0
      %572 = vmatpush1.msra.mxu0 0.0
      %573 = vmatprep.subr.mxu0 0.0
      %574 = vmatpush1.msra.mxu0 0.0
      %575 = vmatprep.subr.mxu0 0.0
      %576 = vmatpush1.msra.mxu0 0.0
      %577 = vmatprep.subr.mxu0 0.0
      %578 = vmatpush1.msra.mxu0 0.0
      %579 = vmatprep.subr.mxu0 0.0
      %580 = vmatpush1.msra.mxu0 0.0
      %581 = vmatprep.subr.mxu0 0.0
      %582 = vmatpush1.msra.mxu0 0.0
      %583 = vmatprep.subr.mxu0 0.0
      %584 = vmatpush1.msra.mxu0 0.0
      %585 = vmatprep.subr.mxu0 0.0
      %586 = vmatpush1.msra.mxu0 0.0
      %587 = vmatprep.subr.mxu0 0.0
      %588 = vmatpush1.msra.mxu0 0.0
      %589 = vmatprep.subr.mxu0 0.0
      %590 = vmatpush1.msra.mxu0 0.0
      %591 = vmatprep.subr.mxu0 0.0
      %592 = vmatpush1.msra.mxu0 0.0
      %593 = vmatprep.subr.mxu0 0.0
      %594 = vmatpush1.msra.mxu0 0.0
      %595 = vmatprep.subr.mxu0 0.0
      %596 = vmatpush1.msra.mxu0 0.0
      %597 = vmatprep.subr.mxu0 0.0
      %598 = vmatpush1.msra.mxu0 0.0
      %599 = vmatprep.mubr.f32.mxu0 0.0
      %v600 = vand.u32 %v513, 4294901760
      %v601 = vsub.f32 %v513, %v600
      %v602 = vand.u32 %v601, 4294901760
      %v603 = vsub.f32 %v601, %v602
      %v604 = vand.u32 %v603, 4294901760
      %605 = vmatmul.mubr.f32.gmra.mrb[0].mxu0 %v604
      %v606 = vpop.f32.mrb[0].mxu0
      %v607 = vadd.f32 %v509, %v606
      %v608 = vpop.f32.mrb[0].mxu0
      %v609 = vadd.f32 %v509, %v608
      %610 = vdwg.mxu0
      %v611 = vand.u32 %v490, 4294901760
      %v612 = vsub.f32 %v490, %v611
      %v613 = vand.u32 %v612, 4294901760
      %v614 = vsub.f32 %v612, %v613
      %v615 = vand.u32 %v614, 4294901760
      %616 = vmatprep.subr.mxu0 %v615
      %v617 = vand.u32 %v489, 4294901760
      %v618 = vsub.f32 %v489, %v617
      %v619 = vand.u32 %v618, 4294901760
      %v620 = vsub.f32 %v618, %v619
      %v621 = vand.u32 %v620, 4294901760
      %622 = vmatpush1.msra.mxu0 %v621
      %v623 = vand.u32 %v493, 4294901760
      %v624 = vsub.f32 %v493, %v623
      %v625 = vand.u32 %v624, 4294901760
      %v626 = vsub.f32 %v624, %v625
      %v627 = vand.u32 %v626, 4294901760
      %628 = vmatprep.subr.mxu0 %v627
      %v629 = vand.u32 %v492, 4294901760
      %v630 = vsub.f32 %v492, %v629
      %v631 = vand.u32 %v630, 4294901760
      %v632 = vsub.f32 %v630, %v631
      %v633 = vand.u32 %v632, 4294901760
      %634 = vmatpush1.msra.mxu0 %v633
      %v635 = vand.u32 %v496, 4294901760
      %v636 = vsub.f32 %v496, %v635
      %v637 = vand.u32 %v636, 4294901760
      %v638 = vsub.f32 %v636, %v637
      %v639 = vand.u32 %v638, 4294901760
      %640 = vmatprep.subr.mxu0 %v639
      %v641 = vand.u32 %v495, 4294901760
      %v642 = vsub.f32 %v495, %v641
      %v643 = vand.u32 %v642, 4294901760
      %v644 = vsub.f32 %v642, %v643
      %v645 = vand.u32 %v644, 4294901760
      %646 = vmatpush1.msra.mxu0 %v645
      %v647 = vand.u32 %v499, 4294901760
      %v648 = vsub.f32 %v499, %v647
      %v649 = vand.u32 %v648, 4294901760
      %v650 = vsub.f32 %v648, %v649
      %v651 = vand.u32 %v650, 4294901760
      %652 = vmatprep.subr.mxu0 %v651
      %v653 = vand.u32 %v498, 4294901760
      %v654 = vsub.f32 %v498, %v653
      %v655 = vand.u32 %v654, 4294901760
      %v656 = vsub.f32 %v654, %v655
      %v657 = vand.u32 %v656, 4294901760
      %658 = vmatpush1.msra.mxu0 %v657
      %v659 = vand.u32 %v520, 4294901760
      %v660 = vsub.f32 %v520, %v659
      %v661 = vand.u32 %v660, 4294901760
      %v662 = vsub.f32 %v660, %v661
      %v663 = vand.u32 %v662, 4294901760
      %664 = vmatprep.subr.mxu0 %v663
      %v665 = vand.u32 %v517, 4294901760
      %v666 = vsub.f32 %v517, %v665
      %v667 = vand.u32 %v666, 4294901760
      %v668 = vsub.f32 %v666, %v667
      %v669 = vand.u32 %v668, 4294901760
      %670 = vmatpush1.msra.mxu0 %v669
      %671 = vmatprep.subr.mxu0 0.0
      %672 = vmatpush1.msra.mxu0 0.0
      %673 = vmatprep.subr.mxu0 0.0
      %674 = vmatpush1.msra.mxu0 0.0
      %675 = vmatprep.subr.mxu0 0.0
      %676 = vmatpush1.msra.mxu0 0.0
      %677 = vmatprep.subr.mxu0 0.0
      %678 = vmatpush1.msra.mxu0 0.0
      %679 = vmatprep.subr.mxu0 0.0
      %680 = vmatpush1.msra.mxu0 0.0
      %681 = vmatprep.subr.mxu0 0.0
      %682 = vmatpush1.msra.mxu0 0.0
      %683 = vmatprep.subr.mxu0 0.0
      %684 = vmatpush1.msra.mxu0 0.0
      %685 = vmatprep.subr.mxu0 0.0
      %686 = vmatpush1.msra.mxu0 0.0
      %687 = vmatprep.subr.mxu0 0.0
      %688 = vmatpush1.msra.mxu0 0.0
      %689 = vmatprep.subr.mxu0 0.0
      %690 = vmatpush1.msra.mxu0 0.0
      %691 = vmatprep.subr.mxu0 0.0
      %692 = vmatpush1.msra.mxu0 0.0
      %693 = vmatprep.subr.mxu0 0.0
      %694 = vmatpush1.msra.mxu0 0.0
      %695 = vmatprep.subr.mxu0 0.0
      %696 = vmatpush1.msra.mxu0 0.0
      %697 = vmatprep.subr.mxu0 0.0
      %698 = vmatpush1.msra.mxu0 0.0
      %699 = vmatprep.subr.mxu0 0.0
      %700 = vmatpush1.msra.mxu0 0.0
      %701 = vmatprep.subr.mxu0 0.0
      %702 = vmatpush1.msra.mxu0 0.0
      %703 = vmatprep.subr.mxu0 0.0
      %704 = vmatpush1.msra.mxu0 0.0
      %705 = vmatprep.subr.mxu0 0.0
      %706 = vmatpush1.msra.mxu0 0.0
      %707 = vmatprep.subr.mxu0 0.0
      %708 = vmatpush1.msra.mxu0 0.0
      %709 = vmatprep.subr.mxu0 0.0
      %710 = vmatpush1.msra.mxu0 0.0
      %711 = vmatprep.subr.mxu0 0.0
      %712 = vmatpush1.msra.mxu0 0.0
      %713 = vmatprep.subr.mxu0 0.0
      %714 = vmatpush1.msra.mxu0 0.0
      %715 = vmatprep.subr.mxu0 0.0
      %716 = vmatpush1.msra.mxu0 0.0
      %717 = vmatprep.subr.mxu0 0.0
      %718 = vmatpush1.msra.mxu0 0.0
      %719 = vmatprep.subr.mxu0 0.0
      %720 = vmatpush1.msra.mxu0 0.0
      %721 = vmatprep.subr.mxu0 0.0
      %722 = vmatpush1.msra.mxu0 0.0
      %723 = vmatprep.subr.mxu0 0.0
      %724 = vmatpush1.msra.mxu0 0.0
      %725 = vmatprep.mubr.f32.mxu0 0.0
      %v726 = vand.u32 %v513, 4294901760
      %727 = vmatmul.mubr.f32.gmra.mrb[0].mxu0 %v726
      %v728 = vpop.f32.mrb[0].mxu0
      %v729 = vadd.f32 %v607, %v728
      %v730 = vpop.f32.mrb[0].mxu0
      %v731 = vadd.f32 %v609, %v730
      %732 = vdwg.mxu0
      %v733 = vand.u32 %v490, 4294901760
      %v734 = vsub.f32 %v490, %v733
      %735 = vmatprep.subr.mxu0 %v734
      %v736 = vand.u32 %v489, 4294901760
      %v737 = vsub.f32 %v489, %v736
      %738 = vmatpush1.msra.mxu0 %v737
      %v739 = vand.u32 %v493, 4294901760
      %v740 = vsub.f32 %v493, %v739
      %741 = vmatprep.subr.mxu0 %v740
      %v742 = vand.u32 %v492, 4294901760
      %v743 = vsub.f32 %v492, %v742
      %744 = vmatpush1.msra.mxu0 %v743
      %v745 = vand.u32 %v496, 4294901760
      %v746 = vsub.f32 %v496, %v745
      %747 = vmatprep.subr.mxu0 %v746
      %v748 = vand.u32 %v495, 4294901760
      %v749 = vsub.f32 %v495, %v748
      %750 = vmatpush1.msra.mxu0 %v749
      %v751 = vand.u32 %v499, 4294901760
      %v752 = vsub.f32 %v499, %v751
      %753 = vmatprep.subr.mxu0 %v752
      %v754 = vand.u32 %v498, 4294901760
      %v755 = vsub.f32 %v498, %v754
      %756 = vmatpush1.msra.mxu0 %v755
      %v757 = vand.u32 %v520, 4294901760
      %v758 = vsub.f32 %v520, %v757
      %759 = vmatprep.subr.mxu0 %v758
      %v760 = vand.u32 %v517, 4294901760
      %v761 = vsub.f32 %v517, %v760
      %762 = vmatpush1.msra.mxu0 %v761
      %763 = vmatprep.subr.mxu0 0.0
      %764 = vmatpush1.msra.mxu0 0.0
      %765 = vmatprep.subr.mxu0 0.0
      %766 = vmatpush1.msra.mxu0 0.0
      %767 = vmatprep.subr.mxu0 0.0
      %768 = vmatpush1.msra.mxu0 0.0
      %769 = vmatprep.subr.mxu0 0.0
      %770 = vmatpush1.msra.mxu0 0.0
      %771 = vmatprep.subr.mxu0 0.0
      %772 = vmatpush1.msra.mxu0 0.0
      %773 = vmatprep.subr.mxu0 0.0
      %774 = vmatpush1.msra.mxu0 0.0
      %775 = vmatprep.subr.mxu0 0.0
      %776 = vmatpush1.msra.mxu0 0.0
      %777 = vmatprep.subr.mxu0 0.0
      %778 = vmatpush1.msra.mxu0 0.0
      %779 = vmatprep.subr.mxu0 0.0
      %780 = vmatpush1.msra.mxu0 0.0
      %781 = vmatprep.subr.mxu0 0.0
      %782 = vmatpush1.msra.mxu0 0.0
      %783 = vmatprep.subr.mxu0 0.0
      %784 = vmatpush1.msra.mxu0 0.0
      %785 = vmatprep.subr.mxu0 0.0
      %786 = vmatpush1.msra.mxu0 0.0
      %787 = vmatprep.subr.mxu0 0.0
      %788 = vmatpush1.msra.mxu0 0.0
      %789 = vmatprep.subr.mxu0 0.0
      %790 = vmatpush1.msra.mxu0 0.0
      %791 = vmatprep.subr.mxu0 0.0
      %792 = vmatpush1.msra.mxu0 0.0
      %793 = vmatprep.subr.mxu0 0.0
      %794 = vmatpush1.msra.mxu0 0.0
      %795 = vmatprep.subr.mxu0 0.0
      %796 = vmatpush1.msra.mxu0 0.0
      %797 = vmatprep.subr.mxu0 0.0
      %798 = vmatpush1.msra.mxu0 0.0
      %799 = vmatprep.subr.mxu0 0.0
      %800 = vmatpush1.msra.mxu0 0.0
      %801 = vmatprep.subr.mxu0 0.0
      %802 = vmatpush1.msra.mxu0 0.0
      %803 = vmatprep.subr.mxu0 0.0
      %804 = vmatpush1.msra.mxu0 0.0
      %805 = vmatprep.subr.mxu0 0.0
      %806 = vmatpush1.msra.mxu0 0.0
      %807 = vmatprep.subr.mxu0 0.0
      %808 = vmatpush1.msra.mxu0 0.0
      %809 = vmatprep.subr.mxu0 0.0
      %810 = vmatpush1.msra.mxu0 0.0
      %811 = vmatprep.subr.mxu0 0.0
      %812 = vmatpush1.msra.mxu0 0.0
      %813 = vmatprep.subr.mxu0 0.0
      %814 = vmatpush1.msra.mxu0 0.0
      %815 = vmatprep.subr.mxu0 0.0
      %816 = vmatpush1.msra.mxu0 0.0
      %817 = vmatprep.mubr.f32.mxu0 0.0
      %v818 = vand.u32 %v513, 4294901760
      %v819 = vsub.f32 %v513, %v818
      %820 = vmatmul.mubr.f32.gmra.mrb[0].mxu0 %v819
      %v821 = vpop.f32.mrb[0].mxu0
      %v822 = vadd.f32 %v729, %v821
      %v823 = vpop.f32.mrb[0].mxu0
      %v824 = vadd.f32 %v731, %v823
      %825 = vdwg.mxu0
      %v826 = vand.u32 %v490, 4294901760
      %827 = vmatprep.subr.mxu0 %v826
      %v828 = vand.u32 %v489, 4294901760
      %829 = vmatpush1.msra.mxu0 %v828
      %v830 = vand.u32 %v493, 4294901760
      %831 = vmatprep.subr.mxu0 %v830
      %v832 = vand.u32 %v492, 4294901760
      %833 = vmatpush1.msra.mxu0 %v832
      %v834 = vand.u32 %v496, 4294901760
      %835 = vmatprep.subr.mxu0 %v834
      %v836 = vand.u32 %v495, 4294901760
      %837 = vmatpush1.msra.mxu0 %v836
      %v838 = vand.u32 %v499, 4294901760
      %839 = vmatprep.subr.mxu0 %v838
      %v840 = vand.u32 %v498, 4294901760
      %841 = vmatpush1.msra.mxu0 %v840
      %v842 = vand.u32 %v520, 4294901760
      %843 = vmatprep.subr.mxu0 %v842
      %v844 = vand.u32 %v517, 4294901760
      %845 = vmatpush1.msra.mxu0 %v844
      %846 = vmatprep.subr.mxu0 0.0
      %847 = vmatpush1.msra.mxu0 0.0
      %848 = vmatprep.subr.mxu0 0.0
      %849 = vmatpush1.msra.mxu0 0.0
      %850 = vmatprep.subr.mxu0 0.0
      %851 = vmatpush1.msra.mxu0 0.0
      %852 = vmatprep.subr.mxu0 0.0
      %853 = vmatpush1.msra.mxu0 0.0
      %854 = vmatprep.subr.mxu0 0.0
      %855 = vmatpush1.msra.mxu0 0.0
      %856 = vmatprep.subr.mxu0 0.0
      %857 = vmatpush1.msra.mxu0 0.0
      %858 = vmatprep.subr.mxu0 0.0
      %859 = vmatpush1.msra.mxu0 0.0
      %860 = vmatprep.subr.mxu0 0.0
      %861 = vmatpush1.msra.mxu0 0.0
      %862 = vmatprep.subr.mxu0 0.0
      %863 = vmatpush1.msra.mxu0 0.0
      %864 = vmatprep.subr.mxu0 0.0
      %865 = vmatpush1.msra.mxu0 0.0
      %866 = vmatprep.subr.mxu0 0.0
      %867 = vmatpush1.msra.mxu0 0.0
      %868 = vmatprep.subr.mxu0 0.0
      %869 = vmatpush1.msra.mxu0 0.0
      %870 = vmatprep.subr.mxu0 0.0
      %871 = vmatpush1.msra.mxu0 0.0
      %872 = vmatprep.subr.mxu0 0.0
      %873 = vmatpush1.msra.mxu0 0.0
      %874 = vmatprep.subr.mxu0 0.0
      %875 = vmatpush1.msra.mxu0 0.0
      %876 = vmatprep.subr.mxu0 0.0
      %877 = vmatpush1.msra.mxu0 0.0
      %878 = vmatprep.subr.mxu0 0.0
      %879 = vmatpush1.msra.mxu0 0.0
      %880 = vmatprep.subr.mxu0 0.0
      %881 = vmatpush1.msra.mxu0 0.0
      %882 = vmatprep.subr.mxu0 0.0
      %883 = vmatpush1.msra.mxu0 0.0
      %884 = vmatprep.subr.mxu0 0.0
      %885 = vmatpush1.msra.mxu0 0.0
      %886 = vmatprep.subr.mxu0 0.0
      %887 = vmatpush1.msra.mxu0 0.0
      %888 = vmatprep.subr.mxu0 0.0
      %889 = vmatpush1.msra.mxu0 0.0
      %890 = vmatprep.subr.mxu0 0.0
      %891 = vmatpush1.msra.mxu0 0.0
      %892 = vmatprep.subr.mxu0 0.0
      %893 = vmatpush1.msra.mxu0 0.0
      %894 = vmatprep.subr.mxu0 0.0
      %895 = vmatpush1.msra.mxu0 0.0
      %896 = vmatprep.subr.mxu0 0.0
      %897 = vmatpush1.msra.mxu0 0.0
      %898 = vmatprep.subr.mxu0 0.0
      %899 = vmatpush1.msra.mxu0 0.0
      %900 = vmatprep.mubr.f32.mxu0 0.0
      %v901 = vand.u32 %v513, 4294901760
      %v902 = vsub.f32 %v513, %v901
      %v903 = vand.u32 %v902, 4294901760
      %904 = vmatmul.mubr.f32.gmra.mrb[0].mxu0 %v903
      %v905 = vpop.f32.mrb[0].mxu0
      %v906 = vadd.f32 %v822, %v905
      %v907 = vpop.f32.mrb[0].mxu0
      %v908 = vadd.f32 %v824, %v907
      %909 = vdwg.mxu0
      %v910 = vand.u32 %v490, 4294901760
      %v911 = vsub.f32 %v490, %v910
      %v912 = vand.u32 %v911, 4294901760
      %913 = vmatprep.subr.mxu0 %v912
      %v914 = vand.u32 %v489, 4294901760
      %v915 = vsub.f32 %v489, %v914
      %v916 = vand.u32 %v915, 4294901760
      %917 = vmatpush1.msra.mxu0 %v916
      %v918 = vand.u32 %v493, 4294901760
      %v919 = vsub.f32 %v493, %v918
      %v920 = vand.u32 %v919, 4294901760
      %921 = vmatprep.subr.mxu0 %v920
      %v922 = vand.u32 %v492, 4294901760
      %v923 = vsub.f32 %v492, %v922
      %v924 = vand.u32 %v923, 4294901760
      %925 = vmatpush1.msra.mxu0 %v924
      %v926 = vand.u32 %v496, 4294901760
      %v927 = vsub.f32 %v496, %v926
      %v928 = vand.u32 %v927, 4294901760
      %929 = vmatprep.subr.mxu0 %v928
      %v930 = vand.u32 %v495, 4294901760
      %v931 = vsub.f32 %v495, %v930
      %v932 = vand.u32 %v931, 4294901760
      %933 = vmatpush1.msra.mxu0 %v932
      %v934 = vand.u32 %v499, 4294901760
      %v935 = vsub.f32 %v499, %v934
      %v936 = vand.u32 %v935, 4294901760
      %937 = vmatprep.subr.mxu0 %v936
      %v938 = vand.u32 %v498, 4294901760
      %v939 = vsub.f32 %v498, %v938
      %v940 = vand.u32 %v939, 4294901760
      %941 = vmatpush1.msra.mxu0 %v940
      %v942 = vand.u32 %v520, 4294901760
      %v943 = vsub.f32 %v520, %v942
      %v944 = vand.u32 %v943, 4294901760
      %945 = vmatprep.subr.mxu0 %v944
      %v946 = vand.u32 %v517, 4294901760
      %v947 = vsub.f32 %v517, %v946
      %v948 = vand.u32 %v947, 4294901760
      %949 = vmatpush1.msra.mxu0 %v948
      %950 = vmatprep.subr.mxu0 0.0
      %951 = vmatpush1.msra.mxu0 0.0
      %952 = vmatprep.subr.mxu0 0.0
      %953 = vmatpush1.msra.mxu0 0.0
      %954 = vmatprep.subr.mxu0 0.0
      %955 = vmatpush1.msra.mxu0 0.0
      %956 = vmatprep.subr.mxu0 0.0
      %957 = vmatpush1.msra.mxu0 0.0
      %958 = vmatprep.subr.mxu0 0.0
      %959 = vmatpush1.msra.mxu0 0.0
      %960 = vmatprep.subr.mxu0 0.0
      %961 = vmatpush1.msra.mxu0 0.0
      %962 = vmatprep.subr.mxu0 0.0
      %963 = vmatpush1.msra.mxu0 0.0
      %964 = vmatprep.subr.mxu0 0.0
      %965 = vmatpush1.msra.mxu0 0.0
      %966 = vmatprep.subr.mxu0 0.0
      %967 = vmatpush1.msra.mxu0 0.0
      %968 = vmatprep.subr.mxu0 0.0
      %969 = vmatpush1.msra.mxu0 0.0
      %970 = vmatprep.subr.mxu0 0.0
      %971 = vmatpush1.msra.mxu0 0.0
      %972 = vmatprep.subr.mxu0 0.0
      %973 = vmatpush1.msra.mxu0 0.0
      %974 = vmatprep.subr.mxu0 0.0
      %975 = vmatpush1.msra.mxu0 0.0
      %976 = vmatprep.subr.mxu0 0.0
      %977 = vmatpush1.msra.mxu0 0.0
      %978 = vmatprep.subr.mxu0 0.0
      %979 = vmatpush1.msra.mxu0 0.0
      %980 = vmatprep.subr.mxu0 0.0
      %981 = vmatpush1.msra.mxu0 0.0
      %982 = vmatprep.subr.mxu0 0.0
      %983 = vmatpush1.msra.mxu0 0.0
      %984 = vmatprep.subr.mxu0 0.0
      %985 = vmatpush1.msra.mxu0 0.0
      %986 = vmatprep.subr.mxu0 0.0
      %987 = vmatpush1.msra.mxu0 0.0
      %988 = vmatprep.subr.mxu0 0.0
      %989 = vmatpush1.msra.mxu0 0.0
      %990 = vmatprep.subr.mxu0 0.0
      %991 = vmatpush1.msra.mxu0 0.0
      %992 = vmatprep.subr.mxu0 0.0
      %993 = vmatpush1.msra.mxu0 0.0
      %994 = vmatprep.subr.mxu0 0.0
      %995 = vmatpush1.msra.mxu0 0.0
      %996 = vmatprep.subr.mxu0 0.0
      %997 = vmatpush1.msra.mxu0 0.0
      %998 = vmatprep.subr.mxu0 0.0
      %999 = vmatpush1.msra.mxu0 0.0
      %1000 = vmatprep.subr.mxu0 0.0
      %1001 = vmatpush1.msra.mxu0 0.0
      %1002 = vmatprep.subr.mxu0 0.0
      %1003 = vmatpush1.msra.mxu0 0.0
      %1004 = vmatprep.mubr.f32.mxu0 0.0
      %v1005 = vand.u32 %v513, 4294901760
      %1006 = vmatmul.mubr.f32.gmra.mrb[0].mxu0 %v1005
      %v1007 = vpop.f32.mrb[0].mxu0
      %v1008 = vadd.f32 %v906, %v1007
      %v1009 = vpop.f32.mrb[0].mxu0
      %v1010 = vadd.f32 %v908, %v1009
      %1011 = vdwg.mxu0
      %v1012 = vand.u32 %v490, 4294901760
      %1013 = vmatprep.subr.mxu0 %v1012
      %v1014 = vand.u32 %v489, 4294901760
      %1015 = vmatpush1.msra.mxu0 %v1014
      %v1016 = vand.u32 %v493, 4294901760
      %1017 = vmatprep.subr.mxu0 %v1016
      %v1018 = vand.u32 %v492, 4294901760
      %1019 = vmatpush1.msra.mxu0 %v1018
      %v1020 = vand.u32 %v496, 4294901760
      %1021 = vmatprep.subr.mxu0 %v1020
      %v1022 = vand.u32 %v495, 4294901760
      %1023 = vmatpush1.msra.mxu0 %v1022
      %v1024 = vand.u32 %v499, 4294901760
      %1025 = vmatprep.subr.mxu0 %v1024
      %v1026 = vand.u32 %v498, 4294901760
      %1027 = vmatpush1.msra.mxu0 %v1026
      %v1028 = vand.u32 %v520, 4294901760
      %1029 = vmatprep.subr.mxu0 %v1028
      %v1030 = vand.u32 %v517, 4294901760
      %1031 = vmatpush1.msra.mxu0 %v1030
      %1032 = vmatprep.subr.mxu0 0.0
      %1033 = vmatpush1.msra.mxu0 0.0
      %1034 = vmatprep.subr.mxu0 0.0
      %1035 = vmatpush1.msra.mxu0 0.0
      %1036 = vmatprep.subr.mxu0 0.0
      %1037 = vmatpush1.msra.mxu0 0.0
      %1038 = vmatprep.subr.mxu0 0.0
      %1039 = vmatpush1.msra.mxu0 0.0
      %1040 = vmatprep.subr.mxu0 0.0
      %1041 = vmatpush1.msra.mxu0 0.0
      %1042 = vmatprep.subr.mxu0 0.0
      %1043 = vmatpush1.msra.mxu0 0.0
      %1044 = vmatprep.subr.mxu0 0.0
      %1045 = vmatpush1.msra.mxu0 0.0
      %1046 = vmatprep.subr.mxu0 0.0
      %1047 = vmatpush1.msra.mxu0 0.0
      %1048 = vmatprep.subr.mxu0 0.0
      %1049 = vmatpush1.msra.mxu0 0.0
      %1050 = vmatprep.subr.mxu0 0.0
      %1051 = vmatpush1.msra.mxu0 0.0
      %1052 = vmatprep.subr.mxu0 0.0
      %1053 = vmatpush1.msra.mxu0 0.0
      %1054 = vmatprep.subr.mxu0 0.0
      %1055 = vmatpush1.msra.mxu0 0.0
      %1056 = vmatprep.subr.mxu0 0.0
      %1057 = vmatpush1.msra.mxu0 0.0
      %1058 = vmatprep.subr.mxu0 0.0
      %1059 = vmatpush1.msra.mxu0 0.0
      %1060 = vmatprep.subr.mxu0 0.0
      %1061 = vmatpush1.msra.mxu0 0.0
      %1062 = vmatprep.subr.mxu0 0.0
      %1063 = vmatpush1.msra.mxu0 0.0
      %1064 = vmatprep.subr.mxu0 0.0
      %1065 = vmatpush1.msra.mxu0 0.0
      %1066 = vmatprep.subr.mxu0 0.0
      %1067 = vmatpush1.msra.mxu0 0.0
      %1068 = vmatprep.subr.mxu0 0.0
      %1069 = vmatpush1.msra.mxu0 0.0
      %1070 = vmatprep.subr.mxu0 0.0
      %1071 = vmatpush1.msra.mxu0 0.0
      %1072 = vmatprep.subr.mxu0 0.0
      %1073 = vmatpush1.msra.mxu0 0.0
      %1074 = vmatprep.subr.mxu0 0.0
      %1075 = vmatpush1.msra.mxu0 0.0
      %1076 = vmatprep.subr.mxu0 0.0
      %1077 = vmatpush1.msra.mxu0 0.0
      %1078 = vmatprep.subr.mxu0 0.0
      %1079 = vmatpush1.msra.mxu0 0.0
      %1080 = vmatprep.subr.mxu0 0.0
      %1081 = vmatpush1.msra.mxu0 0.0
      %1082 = vmatprep.subr.mxu0 0.0
      %1083 = vmatpush1.msra.mxu0 0.0
      %1084 = vmatprep.subr.mxu0 0.0
      %1085 = vmatpush1.msra.mxu0 0.0
      %1086 = vmatprep.mubr.f32.mxu0 0.0
      %v1087 = vand.u32 %v513, 4294901760
      %1088 = vmatmul.mubr.f32.gmra.mrb[0].mxu0 %v1087
      %v1089 = vpop.f32.mrb[0].mxu0
      %v1090 = vadd.f32 %v1008, %v1089
      %v1091 = vpop.f32.mrb[0].mxu0
      %v1092 = vadd.f32 %v1010, %v1091
      %1093 = vdwg.mxu0
      %1094 = vmatprep.subr.mxu0 0.0
      %v1095 = vand.u32 %v491, 4294901760
      %1096 = vmatpush1.msra.mxu0 %v1095
      %1097 = vmatprep.subr.mxu0 0.0
      %v1098 = vand.u32 %v494, 4294901760
      %1099 = vmatpush1.msra.mxu0 %v1098
      %1100 = vmatprep.subr.mxu0 0.0
      %v1101 = vand.u32 %v497, 4294901760
      %1102 = vmatpush1.msra.mxu0 %v1101
      %1103 = vmatprep.subr.mxu0 0.0
      %v1104 = vand.u32 %v500, 4294901760
      %1105 = vmatpush1.msra.mxu0 %v1104
      %1106 = vmatprep.subr.mxu0 0.0
      %v1107 = vand.u32 %v523, 4294901760
      %1108 = vmatpush1.msra.mxu0 %v1107
      %1109 = vmatprep.subr.mxu0 0.0
      %1110 = vmatpush1.msra.mxu0 0.0
      %1111 = vmatprep.subr.mxu0 0.0
      %1112 = vmatpush1.msra.mxu0 0.0
      %1113 = vmatprep.subr.mxu0 0.0
      %1114 = vmatpush1.msra.mxu0 0.0
      %1115 = vmatprep.subr.mxu0 0.0
      %1116 = vmatpush1.msra.mxu0 0.0
      %1117 = vmatprep.subr.mxu0 0.0
      %1118 = vmatpush1.msra.mxu0 0.0
      %1119 = vmatprep.subr.mxu0 0.0
      %1120 = vmatpush1.msra.mxu0 0.0
      %1121 = vmatprep.subr.mxu0 0.0
      %1122 = vmatpush1.msra.mxu0 0.0
      %1123 = vmatprep.subr.mxu0 0.0
      %1124 = vmatpush1.msra.mxu0 0.0
      %1125 = vmatprep.subr.mxu0 0.0
      %1126 = vmatpush1.msra.mxu0 0.0
      %1127 = vmatprep.subr.mxu0 0.0
      %1128 = vmatpush1.msra.mxu0 0.0
      %1129 = vmatprep.subr.mxu0 0.0
      %1130 = vmatpush1.msra.mxu0 0.0
      %1131 = vmatprep.subr.mxu0 0.0
      %1132 = vmatpush1.msra.mxu0 0.0
      %1133 = vmatprep.subr.mxu0 0.0
      %1134 = vmatpush1.msra.mxu0 0.0
      %1135 = vmatprep.subr.mxu0 0.0
      %1136 = vmatpush1.msra.mxu0 0.0
      %1137 = vmatprep.subr.mxu0 0.0
      %1138 = vmatpush1.msra.mxu0 0.0
      %1139 = vmatprep.subr.mxu0 0.0
      %1140 = vmatpush1.msra.mxu0 0.0
      %1141 = vmatprep.subr.mxu0 0.0
      %1142 = vmatpush1.msra.mxu0 0.0
      %1143 = vmatprep.subr.mxu0 0.0
      %1144 = vmatpush1.msra.mxu0 0.0
      %1145 = vmatprep.subr.mxu0 0.0
      %1146 = vmatpush1.msra.mxu0 0.0
      %1147 = vmatprep.subr.mxu0 0.0
      %1148 = vmatpush1.msra.mxu0 0.0
      %1149 = vmatprep.subr.mxu0 0.0
      %1150 = vmatpush1.msra.mxu0 0.0
      %1151 = vmatprep.subr.mxu0 0.0
      %1152 = vmatpush1.msra.mxu0 0.0
      %1153 = vmatprep.subr.mxu0 0.0
      %1154 = vmatpush1.msra.mxu0 0.0
      %1155 = vmatprep.subr.mxu0 0.0
      %1156 = vmatpush1.msra.mxu0 0.0
      %1157 = vmatprep.subr.mxu0 0.0
      %1158 = vmatpush1.msra.mxu0 0.0
      %1159 = vmatprep.subr.mxu0 0.0
      %1160 = vmatpush1.msra.mxu0 0.0
      %1161 = vmatprep.subr.mxu0 0.0
      %1162 = vmatpush1.msra.mxu0 0.0
      %1163 = vmatprep.mubr.f32.mxu0 0.0
      %v1164 = vand.u32 %v513, 4294901760
      %v1165 = vsub.f32 %v513, %v1164
      %v1166 = vand.u32 %v1165, 4294901760
      %v1167 = vsub.f32 %v1165, %v1166
      %v1168 = vand.u32 %v1167, 4294901760
      %1169 = vmatmul.mubr.f32.gmra.mrb[0].mxu0 %v1168
      %v1170 = vpop.f32.mrb[0].mxu0
      %v1171 = vadd.f32 %v509, %v1170
      %v1172 = vpop.f32.mrb[0].mxu0
      %1173 = vdwg.mxu0
      %1174 = vmatprep.subr.mxu0 0.0
      %v1175 = vand.u32 %v491, 4294901760
      %v1176 = vsub.f32 %v491, %v1175
      %v1177 = vand.u32 %v1176, 4294901760
      %v1178 = vsub.f32 %v1176, %v1177
      %v1179 = vand.u32 %v1178, 4294901760
      %1180 = vmatpush1.msra.mxu0 %v1179
      %1181 = vmatprep.subr.mxu0 0.0
      %v1182 = vand.u32 %v494, 4294901760
      %v1183 = vsub.f32 %v494, %v1182
      %v1184 = vand.u32 %v1183, 4294901760
      %v1185 = vsub.f32 %v1183, %v1184
      %v1186 = vand.u32 %v1185, 4294901760
      %1187 = vmatpush1.msra.mxu0 %v1186
      %1188 = vmatprep.subr.mxu0 0.0
      %v1189 = vand.u32 %v497, 4294901760
      %v1190 = vsub.f32 %v497, %v1189
      %v1191 = vand.u32 %v1190, 4294901760
      %v1192 = vsub.f32 %v1190, %v1191
      %v1193 = vand.u32 %v1192, 4294901760
      %1194 = vmatpush1.msra.mxu0 %v1193
      %1195 = vmatprep.subr.mxu0 0.0
      %v1196 = vand.u32 %v500, 4294901760
      %v1197 = vsub.f32 %v500, %v1196
      %v1198 = vand.u32 %v1197, 4294901760
      %v1199 = vsub.f32 %v1197, %v1198
      %v1200 = vand.u32 %v1199, 4294901760
      %1201 = vmatpush1.msra.mxu0 %v1200
      %1202 = vmatprep.subr.mxu0 0.0
      %v1203 = vand.u32 %v523, 4294901760
      %v1204 = vsub.f32 %v523, %v1203
      %v1205 = vand.u32 %v1204, 4294901760
      %v1206 = vsub.f32 %v1204, %v1205
      %v1207 = vand.u32 %v1206, 4294901760
      %1208 = vmatpush1.msra.mxu0 %v1207
      %1209 = vmatprep.subr.mxu0 0.0
      %1210 = vmatpush1.msra.mxu0 0.0
      %1211 = vmatprep.subr.mxu0 0.0
      %1212 = vmatpush1.msra.mxu0 0.0
      %1213 = vmatprep.subr.mxu0 0.0
      %1214 = vmatpush1.msra.mxu0 0.0
      %1215 = vmatprep.subr.mxu0 0.0
      %1216 = vmatpush1.msra.mxu0 0.0
      %1217 = vmatprep.subr.mxu0 0.0
      %1218 = vmatpush1.msra.mxu0 0.0
      %1219 = vmatprep.subr.mxu0 0.0
      %1220 = vmatpush1.msra.mxu0 0.0
      %1221 = vmatprep.subr.mxu0 0.0
      %1222 = vmatpush1.msra.mxu0 0.0
      %1223 = vmatprep.subr.mxu0 0.0
      %1224 = vmatpush1.msra.mxu0 0.0
      %1225 = vmatprep.subr.mxu0 0.0
      %1226 = vmatpush1.msra.mxu0 0.0
      %1227 = vmatprep.subr.mxu0 0.0
      %1228 = vmatpush1.msra.mxu0 0.0
      %1229 = vmatprep.subr.mxu0 0.0
      %1230 = vmatpush1.msra.mxu0 0.0
      %1231 = vmatprep.subr.mxu0 0.0
      %1232 = vmatpush1.msra.mxu0 0.0
      %1233 = vmatprep.subr.mxu0 0.0
      %1234 = vmatpush1.msra.mxu0 0.0
      %1235 = vmatprep.subr.mxu0 0.0
      %1236 = vmatpush1.msra.mxu0 0.0
      %1237 = vmatprep.subr.mxu0 0.0
      %1238 = vmatpush1.msra.mxu0 0.0
      %1239 = vmatprep.subr.mxu0 0.0
      %1240 = vmatpush1.msra.mxu0 0.0
      %1241 = vmatprep.subr.mxu0 0.0
      %1242 = vmatpush1.msra.mxu0 0.0
      %1243 = vmatprep.subr.mxu0 0.0
      %1244 = vmatpush1.msra.mxu0 0.0
      %1245 = vmatprep.subr.mxu0 0.0
      %1246 = vmatpush1.msra.mxu0 0.0
      %1247 = vmatprep.subr.mxu0 0.0
      %1248 = vmatpush1.msra.mxu0 0.0
      %1249 = vmatprep.subr.mxu0 0.0
      %1250 = vmatpush1.msra.mxu0 0.0
      %1251 = vmatprep.subr.mxu0 0.0
      %1252 = vmatpush1.msra.mxu0 0.0
      %1253 = vmatprep.subr.mxu0 0.0
      %1254 = vmatpush1.msra.mxu0 0.0
      %1255 = vmatprep.subr.mxu0 0.0
      %1256 = vmatpush1.msra.mxu0 0.0
      %1257 = vmatprep.subr.mxu0 0.0
      %1258 = vmatpush1.msra.mxu0 0.0
      %1259 = vmatprep.subr.mxu0 0.0
      %1260 = vmatpush1.msra.mxu0 0.0
      %1261 = vmatprep.subr.mxu0 0.0
      %1262 = vmatpush1.msra.mxu0 0.0
      %1263 = vmatprep.mubr.f32.mxu0 0.0
      %v1264 = vand.u32 %v513, 4294901760
      %1265 = vmatmul.mubr.f32.gmra.mrb[0].mxu0 %v1264
      %v1266 = vpop.f32.mrb[0].mxu0
      %v1267 = vadd.f32 %v1171, %v1266
      %v1268 = vpop.f32.mrb[0].mxu0
      %1269 = vdwg.mxu0
      %1270 = vmatprep.subr.mxu0 0.0
      %v1271 = vand.u32 %v491, 4294901760
      %v1272 = vsub.f32 %v491, %v1271
      %1273 = vmatpush1.msra.mxu0 %v1272
      %1274 = vmatprep.subr.mxu0 0.0
      %v1275 = vand.u32 %v494, 4294901760
      %v1276 = vsub.f32 %v494, %v1275
      %1277 = vmatpush1.msra.mxu0 %v1276
      %1278 = vmatprep.subr.mxu0 0.0
      %v1279 = vand.u32 %v497, 4294901760
      %v1280 = vsub.f32 %v497, %v1279
      %1281 = vmatpush1.msra.mxu0 %v1280
      %1282 = vmatprep.subr.mxu0 0.0
      %v1283 = vand.u32 %v500, 4294901760
      %v1284 = vsub.f32 %v500, %v1283
      %1285 = vmatpush1.msra.mxu0 %v1284
      %1286 = vmatprep.subr.mxu0 0.0
      %v1287 = vand.u32 %v523, 4294901760
      %v1288 = vsub.f32 %v523, %v1287
      %1289 = vmatpush1.msra.mxu0 %v1288
      %1290 = vmatprep.subr.mxu0 0.0
      %1291 = vmatpush1.msra.mxu0 0.0
      %1292 = vmatprep.subr.mxu0 0.0
      %1293 = vmatpush1.msra.mxu0 0.0
      %1294 = vmatprep.subr.mxu0 0.0
      %1295 = vmatpush1.msra.mxu0 0.0
      %1296 = vmatprep.subr.mxu0 0.0
      %1297 = vmatpush1.msra.mxu0 0.0
      %1298 = vmatprep.subr.mxu0 0.0
      %1299 = vmatpush1.msra.mxu0 0.0
      %1300 = vmatprep.subr.mxu0 0.0
      %1301 = vmatpush1.msra.mxu0 0.0
      %1302 = vmatprep.subr.mxu0 0.0
      %1303 = vmatpush1.msra.mxu0 0.0
      %1304 = vmatprep.subr.mxu0 0.0
      %1305 = vmatpush1.msra.mxu0 0.0
      %1306 = vmatprep.subr.mxu0 0.0
      %1307 = vmatpush1.msra.mxu0 0.0
      %1308 = vmatprep.subr.mxu0 0.0
      %1309 = vmatpush1.msra.mxu0 0.0
      %1310 = vmatprep.subr.mxu0 0.0
      %1311 = vmatpush1.msra.mxu0 0.0
      %1312 = vmatprep.subr.mxu0 0.0
      %1313 = vmatpush1.msra.mxu0 0.0
      %1314 = vmatprep.subr.mxu0 0.0
      %1315 = vmatpush1.msra.mxu0 0.0
      %1316 = vmatprep.subr.mxu0 0.0
      %1317 = vmatpush1.msra.mxu0 0.0
      %1318 = vmatprep.subr.mxu0 0.0
      %1319 = vmatpush1.msra.mxu0 0.0
      %1320 = vmatprep.subr.mxu0 0.0
      %1321 = vmatpush1.msra.mxu0 0.0
      %1322 = vmatprep.subr.mxu0 0.0
      %1323 = vmatpush1.msra.mxu0 0.0
      %1324 = vmatprep.subr.mxu0 0.0
      %1325 = vmatpush1.msra.mxu0 0.0
      %1326 = vmatprep.subr.mxu0 0.0
      %1327 = vmatpush1.msra.mxu0 0.0
      %1328 = vmatprep.subr.mxu0 0.0
      %1329 = vmatpush1.msra.mxu0 0.0
      %1330 = vmatprep.subr.mxu0 0.0
      %1331 = vmatpush1.msra.mxu0 0.0
      %1332 = vmatprep.subr.mxu0 0.0
      %1333 = vmatpush1.msra.mxu0 0.0
      %1334 = vmatprep.subr.mxu0 0.0
      %1335 = vmatpush1.msra.mxu0 0.0
      %1336 = vmatprep.subr.mxu0 0.0
      %1337 = vmatpush1.msra.mxu0 0.0
      %1338 = vmatprep.subr.mxu0 0.0
      %1339 = vmatpush1.msra.mxu0 0.0
      %1340 = vmatprep.subr.mxu0 0.0
      %1341 = vmatpush1.msra.mxu0 0.0
      %1342 = vmatprep.subr.mxu0 0.0
      %1343 = vmatpush1.msra.mxu0 0.0
      %1344 = vmatprep.mubr.f32.mxu0 0.0
      %v1345 = vand.u32 %v513, 4294901760
      %v1346 = vsub.f32 %v513, %v1345
      %1347 = vmatmul.mubr.f32.gmra.mrb[0].mxu0 %v1346
      %v1348 = vpop.f32.mrb[0].mxu0
      %v1349 = vadd.f32 %v1267, %v1348
      %v1350 = vpop.f32.mrb[0].mxu0
      %1351 = vdwg.mxu0
      %1352 = vmatprep.subr.mxu0 0.0
      %v1353 = vand.u32 %v491, 4294901760
      %1354 = vmatpush1.msra.mxu0 %v1353
      %1355 = vmatprep.subr.mxu0 0.0
      %v1356 = vand.u32 %v494, 4294901760
      %1357 = vmatpush1.msra.mxu0 %v1356
      %1358 = vmatprep.subr.mxu0 0.0
      %v1359 = vand.u32 %v497, 4294901760
      %1360 = vmatpush1.msra.mxu0 %v1359
      %1361 = vmatprep.subr.mxu0 0.0
      %v1362 = vand.u32 %v500, 4294901760
      %1363 = vmatpush1.msra.mxu0 %v1362
      %1364 = vmatprep.subr.mxu0 0.0
      %v1365 = vand.u32 %v523, 4294901760
      %1366 = vmatpush1.msra.mxu0 %v1365
      %1367 = vmatprep.subr.mxu0 0.0
      %1368 = vmatpush1.msra.mxu0 0.0
      %1369 = vmatprep.subr.mxu0 0.0
      %1370 = vmatpush1.msra.mxu0 0.0
      %1371 = vmatprep.subr.mxu0 0.0
      %1372 = vmatpush1.msra.mxu0 0.0
      %1373 = vmatprep.subr.mxu0 0.0
      %1374 = vmatpush1.msra.mxu0 0.0
      %1375 = vmatprep.subr.mxu0 0.0
      %1376 = vmatpush1.msra.mxu0 0.0
      %1377 = vmatprep.subr.mxu0 0.0
      %1378 = vmatpush1.msra.mxu0 0.0
      %1379 = vmatprep.subr.mxu0 0.0
      %1380 = vmatpush1.msra.mxu0 0.0
      %1381 = vmatprep.subr.mxu0 0.0
      %1382 = vmatpush1.msra.mxu0 0.0
      %1383 = vmatprep.subr.mxu0 0.0
      %1384 = vmatpush1.msra.mxu0 0.0
      %1385 = vmatprep.subr.mxu0 0.0
      %1386 = vmatpush1.msra.mxu0 0.0
      %1387 = vmatprep.subr.mxu0 0.0
      %1388 = vmatpush1.msra.mxu0 0.0
      %1389 = vmatprep.subr.mxu0 0.0
      %1390 = vmatpush1.msra.mxu0 0.0
      %1391 = vmatprep.subr.mxu0 0.0
      %1392 = vmatpush1.msra.mxu0 0.0
      %1393 = vmatprep.subr.mxu0 0.0
      %1394 = vmatpush1.msra.mxu0 0.0
      %1395 = vmatprep.subr.mxu0 0.0
      %1396 = vmatpush1.msra.mxu0 0.0
      %1397 = vmatprep.subr.mxu0 0.0
      %1398 = vmatpush1.msra.mxu0 0.0
      %1399 = vmatprep.subr.mxu0 0.0
      %1400 = vmatpush1.msra.mxu0 0.0
      %1401 = vmatprep.subr.mxu0 0.0
      %1402 = vmatpush1.msra.mxu0 0.0
      %1403 = vmatprep.subr.mxu0 0.0
      %1404 = vmatpush1.msra.mxu0 0.0
      %1405 = vmatprep.subr.mxu0 0.0
      %1406 = vmatpush1.msra.mxu0 0.0
      %1407 = vmatprep.subr.mxu0 0.0
      %1408 = vmatpush1.msra.mxu0 0.0
      %1409 = vmatprep.subr.mxu0 0.0
      %1410 = vmatpush1.msra.mxu0 0.0
      %1411 = vmatprep.subr.mxu0 0.0
      %1412 = vmatpush1.msra.mxu0 0.0
      %1413 = vmatprep.subr.mxu0 0.0
      %1414 = vmatpush1.msra.mxu0 0.0
      %1415 = vmatprep.subr.mxu0 0.0
      %1416 = vmatpush1.msra.mxu0 0.0
      %1417 = vmatprep.subr.mxu0 0.0
      %1418 = vmatpush1.msra.mxu0 0.0
      %1419 = vmatprep.subr.mxu0 0.0
      %1420 = vmatpush1.msra.mxu0 0.0
      %1421 = vmatprep.mubr.f32.mxu0 0.0
      %v1422 = vand.u32 %v513, 4294901760
      %v1423 = vsub.f32 %v513, %v1422
      %v1424 = vand.u32 %v1423, 4294901760
      %1425 = vmatmul.mubr.f32.gmra.mrb[0].mxu0 %v1424
      %v1426 = vpop.f32.mrb[0].mxu0
      %v1427 = vadd.f32 %v1349, %v1426
      %v1428 = vpop.f32.mrb[0].mxu0
      %1429 = vdwg.mxu0
      %1430 = vmatprep.subr.mxu0 0.0
      %v1431 = vand.u32 %v491, 4294901760
      %v1432 = vsub.f32 %v491, %v1431
      %v1433 = vand.u32 %v1432, 4294901760
      %1434 = vmatpush1.msra.mxu0 %v1433
      %1435 = vmatprep.subr.mxu0 0.0
      %v1436 = vand.u32 %v494, 4294901760
      %v1437 = vsub.f32 %v494, %v1436
      %v1438 = vand.u32 %v1437, 4294901760
      %1439 = vmatpush1.msra.mxu0 %v1438
      %1440 = vmatprep.subr.mxu0 0.0
      %v1441 = vand.u32 %v497, 4294901760
      %v1442 = vsub.f32 %v497, %v1441
      %v1443 = vand.u32 %v1442, 4294901760
      %1444 = vmatpush1.msra.mxu0 %v1443
      %1445 = vmatprep.subr.mxu0 0.0
      %v1446 = vand.u32 %v500, 4294901760
      %v1447 = vsub.f32 %v500, %v1446
      %v1448 = vand.u32 %v1447, 4294901760
      %1449 = vmatpush1.msra.mxu0 %v1448
      %1450 = vmatprep.subr.mxu0 0.0
      %v1451 = vand.u32 %v523, 4294901760
      %v1452 = vsub.f32 %v523, %v1451
      %v1453 = vand.u32 %v1452, 4294901760
      %1454 = vmatpush1.msra.mxu0 %v1453
      %1455 = vmatprep.subr.mxu0 0.0
      %1456 = vmatpush1.msra.mxu0 0.0
      %1457 = vmatprep.subr.mxu0 0.0
      %1458 = vmatpush1.msra.mxu0 0.0
      %1459 = vmatprep.subr.mxu0 0.0
      %1460 = vmatpush1.msra.mxu0 0.0
      %1461 = vmatprep.subr.mxu0 0.0
      %1462 = vmatpush1.msra.mxu0 0.0
      %1463 = vmatprep.subr.mxu0 0.0
      %1464 = vmatpush1.msra.mxu0 0.0
      %1465 = vmatprep.subr.mxu0 0.0
      %1466 = vmatpush1.msra.mxu0 0.0
      %1467 = vmatprep.subr.mxu0 0.0
      %1468 = vmatpush1.msra.mxu0 0.0
      %1469 = vmatprep.subr.mxu0 0.0
      %1470 = vmatpush1.msra.mxu0 0.0
      %1471 = vmatprep.subr.mxu0 0.0
      %1472 = vmatpush1.msra.mxu0 0.0
      %1473 = vmatprep.subr.mxu0 0.0
      %1474 = vmatpush1.msra.mxu0 0.0
      %1475 = vmatprep.subr.mxu0 0.0
      %1476 = vmatpush1.msra.mxu0 0.0
      %1477 = vmatprep.subr.mxu0 0.0
      %1478 = vmatpush1.msra.mxu0 0.0
      %1479 = vmatprep.subr.mxu0 0.0
      %1480 = vmatpush1.msra.mxu0 0.0
      %1481 = vmatprep.subr.mxu0 0.0
      %1482 = vmatpush1.msra.mxu0 0.0
      %1483 = vmatprep.subr.mxu0 0.0
      %1484 = vmatpush1.msra.mxu0 0.0
      %1485 = vmatprep.subr.mxu0 0.0
      %1486 = vmatpush1.msra.mxu0 0.0
      %1487 = vmatprep.subr.mxu0 0.0
      %1488 = vmatpush1.msra.mxu0 0.0
      %1489 = vmatprep.subr.mxu0 0.0
      %1490 = vmatpush1.msra.mxu0 0.0
      %1491 = vmatprep.subr.mxu0 0.0
      %1492 = vmatpush1.msra.mxu0 0.0
      %1493 = vmatprep.subr.mxu0 0.0
      %1494 = vmatpush1.msra.mxu0 0.0
      %1495 = vmatprep.subr.mxu0 0.0
      %1496 = vmatpush1.msra.mxu0 0.0
      %1497 = vmatprep.subr.mxu0 0.0
      %1498 = vmatpush1.msra.mxu0 0.0
      %1499 = vmatprep.subr.mxu0 0.0
      %1500 = vmatpush1.msra.mxu0 0.0
      %1501 = vmatprep.subr.mxu0 0.0
      %1502 = vmatpush1.msra.mxu0 0.0
      %1503 = vmatprep.subr.mxu0 0.0
      %1504 = vmatpush1.msra.mxu0 0.0
      %1505 = vmatprep.subr.mxu0 0.0
      %1506 = vmatpush1.msra.mxu0 0.0
      %1507 = vmatprep.subr.mxu0 0.0
      %1508 = vmatpush1.msra.mxu0 0.0
      %1509 = vmatprep.mubr.f32.mxu0 0.0
      %v1510 = vand.u32 %v513, 4294901760
      %1511 = vmatmul.mubr.f32.gmra.mrb[0].mxu0 %v1510
      %v1512 = vpop.f32.mrb[0].mxu0
      %v1513 = vadd.f32 %v1427, %v1512
      %v1514 = vpop.f32.mrb[0].mxu0
      %1515 = vdwg.mxu0
      %1516 = vmatprep.subr.mxu0 0.0
      %v1517 = vand.u32 %v491, 4294901760
      %1518 = vmatpush1.msra.mxu0 %v1517
      %1519 = vmatprep.subr.mxu0 0.0
      %v1520 = vand.u32 %v494, 4294901760
      %1521 = vmatpush1.msra.mxu0 %v1520
      %1522 = vmatprep.subr.mxu0 0.0
      %v1523 = vand.u32 %v497, 4294901760
      %1524 = vmatpush1.msra.mxu0 %v1523
      %1525 = vmatprep.subr.mxu0 0.0
      %v1526 = vand.u32 %v500, 4294901760
      %1527 = vmatpush1.msra.mxu0 %v1526
      %1528 = vmatprep.subr.mxu0 0.0
      %v1529 = vand.u32 %v523, 4294901760
      %1530 = vmatpush1.msra.mxu0 %v1529
      %1531 = vmatprep.subr.mxu0 0.0
      %1532 = vmatpush1.msra.mxu0 0.0
      %1533 = vmatprep.subr.mxu0 0.0
      %1534 = vmatpush1.msra.mxu0 0.0
      %1535 = vmatprep.subr.mxu0 0.0
      %1536 = vmatpush1.msra.mxu0 0.0
      %1537 = vmatprep.subr.mxu0 0.0
      %1538 = vmatpush1.msra.mxu0 0.0
      %1539 = vmatprep.subr.mxu0 0.0
      %1540 = vmatpush1.msra.mxu0 0.0
      %1541 = vmatprep.subr.mxu0 0.0
      %1542 = vmatpush1.msra.mxu0 0.0
      %1543 = vmatprep.subr.mxu0 0.0
      %1544 = vmatpush1.msra.mxu0 0.0
      %1545 = vmatprep.subr.mxu0 0.0
      %1546 = vmatpush1.msra.mxu0 0.0
      %1547 = vmatprep.subr.mxu0 0.0
      %1548 = vmatpush1.msra.mxu0 0.0
      %1549 = vmatprep.subr.mxu0 0.0
      %1550 = vmatpush1.msra.mxu0 0.0
      %1551 = vmatprep.subr.mxu0 0.0
      %1552 = vmatpush1.msra.mxu0 0.0
      %1553 = vmatprep.subr.mxu0 0.0
      %1554 = vmatpush1.msra.mxu0 0.0
      %1555 = vmatprep.subr.mxu0 0.0
      %1556 = vmatpush1.msra.mxu0 0.0
      %1557 = vmatprep.subr.mxu0 0.0
      %1558 = vmatpush1.msra.mxu0 0.0
      %1559 = vmatprep.subr.mxu0 0.0
      %1560 = vmatpush1.msra.mxu0 0.0
      %1561 = vmatprep.subr.mxu0 0.0
      %1562 = vmatpush1.msra.mxu0 0.0
      %1563 = vmatprep.subr.mxu0 0.0
      %1564 = vmatpush1.msra.mxu0 0.0
      %1565 = vmatprep.subr.mxu0 0.0
      %1566 = vmatpush1.msra.mxu0 0.0
      %1567 = vmatprep.subr.mxu0 0.0
      %1568 = vmatpush1.msra.mxu0 0.0
      %1569 = vmatprep.subr.mxu0 0.0
      %1570 = vmatpush1.msra.mxu0 0.0
      %1571 = vmatprep.subr.mxu0 0.0
      %1572 = vmatpush1.msra.mxu0 0.0
      %1573 = vmatprep.subr.mxu0 0.0
      %1574 = vmatpush1.msra.mxu0 0.0
      %1575 = vmatprep.subr.mxu0 0.0
      %1576 = vmatpush1.msra.mxu0 0.0
      %1577 = vmatprep.subr.mxu0 0.0
      %1578 = vmatpush1.msra.mxu0 0.0
      %1579 = vmatprep.subr.mxu0 0.0
      %1580 = vmatpush1.msra.mxu0 0.0
      %1581 = vmatprep.subr.mxu0 0.0
      %1582 = vmatpush1.msra.mxu0 0.0
      %1583 = vmatprep.subr.mxu0 0.0
      %1584 = vmatpush1.msra.mxu0 0.0
      %1585 = vmatprep.mubr.f32.mxu0 0.0
      %v1586 = vand.u32 %v513, 4294901760
      %1587 = vmatmul.mubr.f32.gmra.mrb[0].mxu0 %v1586
      %v1588 = vpop.f32.mrb[0].mxu0
      %v1589 = vadd.f32 %v1513, %v1588
      %v1590 = vpop.f32.mrb[0].mxu0
      %1591 = vdwg.mxu0
      %1592 = vst [vmem:[%s146] sm:$0xff] %v1090
      %1593 = vst [vmem:[%s146 + $0x8] sm:$0xff] %v1092
      %1594 = vst [vmem:[%s146 + $0x10] sm:$0xff] %v1589
      %s1595 = smul.u32 3, %s19
      %p1596 = scmp.lt.s32.totalorder %s18, 1
      %s1597 = scalar_select %p1596, %s18, 1
      %p1598 = scmp.lt.s32.totalorder %s1595, 2
      %s1599 = scalar_select %p1598, %s1595, 2
      %s1600 = smul.addr %s1597, 3
      %s1601 = sadd.s32 %s1599, %s1600
      %s1602 = smul.addr %s1601, 8
      %s1603 = scalar_lea.vmem %s3, %s1602
      // Predicated region
      $region105: #{conv2d_nchw.1} parent=27 // pred_check
        %p1604 = pneg %p88
      $region106: #{conv2d_nchw.1} parent=27 // pred_check_branch
        %1606 = sbr.rel (%p1604) target = $region108
      $region107: #{conv2d_nchw.1} parent=27 // pred_region
        %s1607 = smul.u32 3, %s19
      $region108: #{conv2d_nchw.1} parent=27 // pred_fallthru
        _
    $region28: #{conv2d_nchw.1} parent=5 // pred_fallthru
      _
    %p1608 = scmp.le.s32.totalorder 2, %s9
    // Predicated region
    $region109: #{conv2d_nchw.1} parent=5 // pred_check
      %p1609 = pneg %p1608
    $region110: #{conv2d_nchw.1} parent=5 // pred_check_branch
      %1611 = sbr.rel (%p1609) target = $region112
    $region111: #{conv2d_nchw.1} parent=5 // pred_region
      %s1612 = ssub.s32 %s9, 2
      // Predicated region
      $region113: #{conv2d_nchw.1} parent=111 // pred_check
        %p1613 = pneg %p94
      $region114: #{conv2d_nchw.1} parent=111 // pred_check_branch
        %1615 = sbr.rel (%p1613) target = $region116
      $region115: #{conv2d_nchw.1} parent=111 // pred_region
        %s1616 = smul.u32 3, %s21
        %p1617 = scmp.lt.s32.totalorder %s20, 1
        %s1618 = scalar_select %p1617, %s20, 1
        %p1619 = scmp.lt.s32.totalorder %s1616, 2
        %s1620 = scalar_select %p1619, %s1616, 2
        %s1621 = smul.addr %s1618, 3
        %s1622 = sadd.s32 %s1620, %s1621
        %s1623 = smul.addr %s1622, 8
        %s1624 = scalar_lea.vmem %s3, %s1623
      $region116: #{conv2d_nchw.1} parent=111 // pred_fallthru
        _
    $region112: #{conv2d_nchw.1} parent=5 // pred_fallthru
      _
  $region6: #{conv2d_nchw.1} parent=0 // loop_footer
    %s13 = sadd.s32 1, %s9
  $region7: #{conv2d_nchw.1} parent=0 // loop_footer_branch
    %8 = sbr.rel target = $region3
  $region8: #{conv2d_nchw.1} parent=0 // loop_exit
    _
  %1625 = vsyncmov [#allocation4]
  %s1626 = vpop.sfrf %1625
  %p1627 = scmp.eq.s32.totalorder %s1626, 0
  %p1628 = pneg %p1627
  %1630 = shalt.err (%p1628)
  %s1631 = scalar_lea.sflag [#allocation4], 1
  %1632 = vsyncmov %s1631
  %s1633 = vpop.sfrf %1632
  %p1634 = scmp.eq.s32.totalorder %s1633, 0
  %p1635 = pneg %p1634
  %1637 = shalt.err (%p1635)

</llo_original>
